<compile_context>
chip_gen: v7x
topology: tpu7x:2x2x1
jax: 0.10.0
libtpu: 0.0.40
codegen_flags: <defaults>
</compile_context>

<pallas_src>
import functools

import jax
import jax.numpy as jnp
from jax.experimental import pallas as pl
from jax.experimental.pallas import tpu as pltpu


def _round_up(x, m):
    return ((x + m - 1) // m) * m


def _make_kernel(k, Wf, Wlf, Chp, Clp, CO, Lh, Ll, Hl_out, sy):
    """Fused conv(high) + conv(low)@low-res + nearest-up + bias + ReLU."""
    kk = k * k
    offs_h = [ky * Wf + kx for ky in range(k) for kx in range(k)]
    offs_l = [ky * Wlf + kx for ky in range(k) for kx in range(k)]

    def kernel(hx_ref, lx_ref, wh_ref, wl_ref, e_ref, b_ref, o_ref,
               rhs_h_ref, rhs_l_ref):
        # hx_ref : (Chp, NPH) bf16  flattened padded high input (row stride Wf)
        # lx_ref : (Clp, NPL) bf16  flattened padded LOW-RES low input (stride Wlf)
        # wh_ref : (CO, kk*Chp) bf16 ; wl_ref: (CO, kk*Clp) bf16  (tap-major)
        # e_ref  : (Wlf, Wf) f32    one-hot lane-expansion (nearest x-upsample)
        # b_ref  : (CO, 1) f32      folded (h2h + l2h) bias
        # o_ref  : (CO, Lh) bf16    lane-dense flattened NCHW output

        # im2col in VMEM: stack the k*k shifted views so a SINGLE MXU call
        # contracts over taps AND channels instead of 2*k*k tiny dots plus
        # accumulator read-modify-write traffic.
        for t in range(kk):
            oh = offs_h[t]
            rhs_h_ref[t * Chp:(t + 1) * Chp, :] = hx_ref[:, oh:oh + Lh]
            ol = offs_l[t]
            rhs_l_ref[t * Clp:(t + 1) * Clp, :] = lx_ref[:, ol:ol + Ll]

        high = jnp.dot(wh_ref[...], rhs_h_ref[...],
                       preferred_element_type=jnp.float32)      # (CO, Lh)
        low = jnp.dot(wl_ref[...], rhs_l_ref[...],
                      preferred_element_type=jnp.float32)       # (CO, Ll)

        bias = b_ref[...]                                       # (CO, 1)
        expand = e_ref[...]                                     # (Wlf, Wf)

        # Nearest upsample fused into the add/ReLU/store.  Per low-res row:
        # one tiny one-hot matmul does the x (lane) replication; the sy row
        # copies reuse the same (CO, Wf) row, so no reshape/gather is needed.
        # TODO(synk): for large images tile Lh (row bands) so `high` stays in
        # vregs and add a second "parallel" grid axis with a (k-1)-row halo so
        # per-step VMEM fits v7x's 64 MiB and both TensorCores are used at B=1.
        for yl in range(Hl_out):
            row = jnp.dot(low[:, yl * Wlf:(yl + 1) * Wlf], expand,
                          preferred_element_type=jnp.float32)   # (CO, Wf)
            for ry in range(sy):
                y = sy * yl + ry
                o_ref[:, y * Wf:(y + 1) * Wf] = jnp.maximum(
                    high[:, y * Wf:(y + 1) * Wf] + row + bias, 0.0
                ).astype(o_ref.dtype)

    return kernel


@functools.partial(jax.jit, static_argnames=("kernel_size", "padding"))
def oct_conv_out_block(h_x, l_x, w_h2h, b_h2h, w_l2h, b_l2h,
                       kernel_size=3, padding=1):
    """h_x: (B, Ch, H, W); l_x: (B, Cl, Hl, Wl).  Returns (B, CO, H_out, W_out) bf16."""
    B, Ch, H, W = h_x.shape
    _, Cl, Hl, Wl = l_x.shape
    CO = w_h2h.shape[0]
    k = kernel_size
    p = padding

    H_out, W_out = H + 2 * p - k + 1, W + 2 * p - k + 1
    Hl_out, Wl_out = Hl + 2 * p - k + 1, Wl + 2 * p - k + 1
    sy, sx = H_out // Hl_out, W_out // Wl_out
    if sy * Hl_out != H_out or sx * Wl_out != W_out:
        # TODO(synk): non-integer nearest scale factors are not fused in-kernel.
        raise NotImplementedError("nearest upsample factor must be an integer")

    # Frame widths: every padded-low-input / low-output row occupies Wlf lanes
    # and every full-res row occupies Wf = sx*Wlf lanes, so a conv tap is a
    # constant lane offset and low lane j upsamples to full-res lanes sx*j..+sx.
    Wlf = max(Wl + 2 * p, -(-(W + 2 * p) // sx))
    if W + 2 * p >= 96:
        Wlf = _round_up(Wlf, 128)       # lane-align tap offsets for large images
    Wf = sx * Wlf
    Lh = H_out * Wf
    Ll = Hl_out * Wlf

    Chp = _round_up(Ch, 16)             # bf16 packs 16 rows per sublane group
    Clp = _round_up(Cl, 16)
    KH = k * k * Chp
    KL = k * k * Clp

    # ---- activations: single fused cast+pad per tensor, then a free flatten ----
    reh = -(-(k - 1) // Wf)             # extra frame rows so last taps stay in range
    hp = jnp.pad(h_x.astype(jnp.bfloat16),
                 ((0, 0), (0, Chp - Ch), (p, p + reh), (p, Wf - W - p)))
    NPH = (H + 2 * p + reh) * Wf
    hp = hp.reshape(B, Chp, NPH)

    rel = -(-(k - 1) // Wlf)
    lp = jnp.pad(l_x.astype(jnp.bfloat16),
                 ((0, 0), (0, Clp - Cl), (p, p + rel), (p, Wlf - Wl - p)))
    NPL = (Hl + 2 * p + rel) * Wlf
    lp = lp.reshape(B, Clp, NPL)

    # ---- weights: (CO, Ci, k, k) -> (CO, k*k*Cip), tap-major, matching the RHS ----
    def pack_w(w, Ci, Cip):
        wt = jnp.transpose(w, (2, 3, 1, 0)).reshape(k * k, Ci, CO)
        wt = jnp.pad(wt, ((0, 0), (0, Cip - Ci), (0, 0)))
        return wt.reshape(k * k * Cip, CO).T.astype(jnp.bfloat16)

    wh = pack_w(w_h2h, Ch, Chp)
    wl = pack_w(w_l2h, Cl, Clp)

    # One-hot lane-expansion matrix for the nearest x-upsample (Wlf -> Wf lanes).
    e = (jnp.arange(Wlf)[:, None] == (jnp.arange(Wf) // sx)[None, :]
         ).astype(jnp.float32)

    # ReLU(conv_h + b_h + up(conv_l + b_l)) == ReLU(high + up(low) + (b_h + b_l)).
    bias = (b_h2h + b_l2h).reshape(CO, 1).astype(jnp.float32)

    kernel = _make_kernel(k, Wf, Wlf, Chp, Clp, CO, Lh, Ll, Hl_out, sy)

    flops = 2 * B * (CO * KH * Lh + CO * KL * Ll + Hl_out * CO * Wlf * Wf)
    bytes_accessed = (B * (Chp * NPH + Clp * NPL) * 2
                      + CO * (KH + KL) * 2 + Wlf * Wf * 4 + CO * 4
                      + B * CO * Lh * 2)

    vmem_need = (2 * (Chp * NPH + Clp * NPL) * 2      # double-buffered activations
                 + 2 * CO * Lh * 2                    # double-buffered output
                 + 2 * (CO * (KH + KL) * 2 + Wlf * Wf * 4 + CO * 4)
                 + (KH * Lh + KL * Ll) * 2            # im2col scratch
                 + CO * (Lh + Ll + 2 * Wf) * 4)       # f32 temporaries
    vmem_limit = int(min(max(2 * vmem_need, 32 * 1024 * 1024),
                         64 * 1024 * 1024))           # also fits v7x's 64 MiB VMEM

    out = pl.pallas_call(
        kernel,
        out_shape=jax.ShapeDtypeStruct((B, CO, Lh), jnp.bfloat16),
        grid=(B,),
        in_specs=[
            pl.BlockSpec((None, Chp, NPH), lambda b: (b, 0, 0)),
            pl.BlockSpec((None, Clp, NPL), lambda b: (b, 0, 0)),
            pl.BlockSpec((CO, KH), lambda b: (0, 0)),
            pl.BlockSpec((CO, KL), lambda b: (0, 0)),
            pl.BlockSpec((Wlf, Wf), lambda b: (0, 0)),
            pl.BlockSpec((CO, 1), lambda b: (0, 0)),
        ],
        out_specs=pl.BlockSpec((None, CO, Lh), lambda b: (b, 0, 0)),
        scratch_shapes=[pltpu.VMEM((KH, Lh), jnp.bfloat16),
                        pltpu.VMEM((KL, Ll), jnp.bfloat16)],
        compiler_params=pltpu.CompilerParams(
            dimension_semantics=("parallel",),
            vmem_limit_bytes=vmem_limit),
        cost_estimate=pl.CostEstimate(
            flops=flops, transcendentals=0, bytes_accessed=bytes_accessed),
    )(hp, lp, wh, wl, e, bias)

    # (B, CO, Lh) -> (B, CO, H_out, Wf) is a free reshape; one bf16 slice drops
    # the frame columns (layout is already NCHW order, so no transpose).
    out = out.reshape(B, CO, H_out, Wf)[:, :, :, :W_out]
    return out


# ------------------------------ reference -----------------------------------
def _reference(h_x, l_x, w_h2h, b_h2h, w_l2h, b_l2h, padding=1):
    def conv(x, w, b):
        y = jax.lax.conv_general_dilated(
            x, w, window_strides=(1, 1),
            padding=((padding, padding), (padding, padding)),
            dimension_numbers=("NCHW", "OIHW", "NCHW"))
        return y + b[None, :, None, None]
    h2h = conv(h_x, w_h2h, b_h2h)
    l2h = conv(l_x, w_l2h, b_l2h)
    sy = h2h.shape[2] // l2h.shape[2]
    sx = h2h.shape[3] // l2h.shape[3]
    l2h_up = jnp.repeat(jnp.repeat(l2h, sy, axis=2), sx, axis=3)  # nearest
    return jnp.maximum(h2h + l2h_up, 0.0)


if __name__ == "__main__":
    # Module config: in_channels=8, alpha_in=0.5 -> h_in=4, l_in=4,
    # out_channels=8, kernel_size=3, stride=1, padding=1, bias=True, ReLU.
    key = jax.random.PRNGKey(0)
    k_hx, k_lx, k_wh, k_bh, k_wl, k_bl = jax.random.split(key, 6)

    B, Ch, Cl, CO, H, W = 2, 4, 4, 8, 16, 16
    Hl, Wl = H // 2, W // 2

    h_x = jax.random.normal(k_hx, (B, Ch, H, W), jnp.float32)
    l_x = jax.random.normal(k_lx, (B, Cl, Hl, Wl), jnp.float32)
    w_h2h = jax.random.normal(k_wh, (CO, Ch, 3, 3), jnp.float32) * 0.1
    b_h2h = jax.random.normal(k_bh, (CO,), jnp.float32) * 0.1
    w_l2h = jax.random.normal(k_wl, (CO, Cl, 3, 3), jnp.float32) * 0.1
    b_l2h = jax.random.normal(k_bl, (CO,), jnp.float32) * 0.1

    out = oct_conv_out_block(h_x, l_x, w_h2h, b_h2h, w_l2h, b_l2h)
    out = jax.block_until_ready(out)

    ref = _reference(h_x, l_x, w_h2h, b_h2h, w_l2h, b_l2h)
    assert out.shape == (B, CO, H, W), out.shape
    # bf16 activations/weights/output with f32 accumulation -> relaxed tolerance.
    out_f32 = out.astype(jnp.float32)
    max_err = float(jnp.max(jnp.abs(out_f32 - ref)))
    assert jnp.allclose(out_f32, ref, atol=1e-1, rtol=1e-1), max_err

    print("KERNEL_OK")
</pallas_src>

<mosaic_0001>
module attributes {stable_mosaic.version = 11 : i64} {
  func.func @kernel(%arg0: i32, %arg1: memref<1x16x380xbf16, #tpu.memory_space<vmem>>, %arg2: memref<1x16x110xbf16, #tpu.memory_space<vmem>>, %arg3: memref<8x144xbf16, #tpu.memory_space<vmem>>, %arg4: memref<8x144xbf16, #tpu.memory_space<vmem>>, %arg5: memref<10x20xf32, #tpu.memory_space<vmem>>, %arg6: memref<8x1xf32, #tpu.memory_space<vmem>>, %arg7: memref<1x8x320xbf16, #tpu.memory_space<vmem>>, %arg8: memref<144x320xbf16, #tpu.memory_space<vmem>>, %arg9: memref<144x80xbf16, #tpu.memory_space<vmem>>) attributes {dimension_semantics = [#tpu.dimension_semantics<parallel>], iteration_bounds = array<i64: 2>, scalar_prefetch = 0 : i64, scratch_operands = 2 : i64, tpu.core_type = #tpu.core_type<tc>, window_params = [{transform_indices = @transform_0, window_bounds = array<i64: 1, 16, 380>}, {transform_indices = @transform_1, window_bounds = array<i64: 1, 16, 110>}, {pipeline_mode = #tpu.pipeline_mode<synchronous>, transform_indices = @transform_2, window_bounds = array<i64: 8, 144>}, {pipeline_mode = #tpu.pipeline_mode<synchronous>, transform_indices = @transform_3, window_bounds = array<i64: 8, 144>}, {pipeline_mode = #tpu.pipeline_mode<synchronous>, transform_indices = @transform_4, window_bounds = array<i64: 10, 20>}, {pipeline_mode = #tpu.pipeline_mode<synchronous>, transform_indices = @transform_5, window_bounds = array<i64: 8, 1>}, {transform_indices = @transform_6, window_bounds = array<i64: 1, 8, 320>}]} {
    %c0 = arith.constant 0 : index
    %c0_0 = arith.constant 0 : index
    %c0_1 = arith.constant 0 : index
    %0 = vector.load %arg1[%c0, %c0_0, %c0_1] : memref<1x16x380xbf16, #tpu.memory_space<vmem>>, vector<1x16x320xbf16>
    %1 = vector.shape_cast %0 : vector<1x16x320xbf16> to vector<16x320xbf16>
    %c0_2 = arith.constant 0 : index
    %c0_3 = arith.constant 0 : index
    %2 = vector.load %arg8[%c0_2, %c0_3] : memref<144x320xbf16, #tpu.memory_space<vmem>>, vector<16x320xbf16>
    tpu.vector_store %arg8[%c0_2, %c0_3], %1 {strides = array<i32>} : memref<144x320xbf16, #tpu.memory_space<vmem>>, vector<16x320xbf16>,
    %c0_4 = arith.constant 0 : index
    %c0_5 = arith.constant 0 : index
    %c0_6 = arith.constant 0 : index
    %3 = vector.load %arg2[%c0_4, %c0_5, %c0_6] : memref<1x16x110xbf16, #tpu.memory_space<vmem>>, vector<1x16x80xbf16>
    %4 = vector.shape_cast %3 : vector<1x16x80xbf16> to vector<16x80xbf16>
    %c0_7 = arith.constant 0 : index
    %c0_8 = arith.constant 0 : index
    %5 = vector.load %arg9[%c0_7, %c0_8] : memref<144x80xbf16, #tpu.memory_space<vmem>>, vector<16x80xbf16>
    tpu.vector_store %arg9[%c0_7, %c0_8], %4 {strides = array<i32>} : memref<144x80xbf16, #tpu.memory_space<vmem>>, vector<16x80xbf16>,
    %c0_9 = arith.constant 0 : index
    %c0_10 = arith.constant 0 : index
    %c1 = arith.constant 1 : index
    %6 = vector.load %arg1[%c0_9, %c0_10, %c1] : memref<1x16x380xbf16, #tpu.memory_space<vmem>>, vector<1x16x320xbf16>
    %7 = vector.shape_cast %6 : vector<1x16x320xbf16> to vector<16x320xbf16>
    %c16 = arith.constant 16 : index
    %c0_11 = arith.constant 0 : index
    %8 = vector.load %arg8[%c16, %c0_11] : memref<144x320xbf16, #tpu.memory_space<vmem>>, vector<16x320xbf16>
    tpu.vector_store %arg8[%c16, %c0_11], %7 {strides = array<i32>} : memref<144x320xbf16, #tpu.memory_space<vmem>>, vector<16x320xbf16>,
    %c0_12 = arith.constant 0 : index
    %c0_13 = arith.constant 0 : index
    %c1_14 = arith.constant 1 : index
    %9 = vector.load %arg2[%c0_12, %c0_13, %c1_14] : memref<1x16x110xbf16, #tpu.memory_space<vmem>>, vector<1x16x80xbf16>
    %10 = vector.shape_cast %9 : vector<1x16x80xbf16> to vector<16x80xbf16>
    %c16_15 = arith.constant 16 : index
    %c0_16 = arith.constant 0 : index
    %11 = vector.load %arg9[%c16_15, %c0_16] : memref<144x80xbf16, #tpu.memory_space<vmem>>, vector<16x80xbf16>
    tpu.vector_store %arg9[%c16_15, %c0_16], %10 {strides = array<i32>} : memref<144x80xbf16, #tpu.memory_space<vmem>>, vector<16x80xbf16>,
    %c0_17 = arith.constant 0 : index
    %c0_18 = arith.constant 0 : index
    %c2 = arith.constant 2 : index
    %12 = vector.load %arg1[%c0_17, %c0_18, %c2] : memref<1x16x380xbf16, #tpu.memory_space<vmem>>, vector<1x16x320xbf16>
    %13 = vector.shape_cast %12 : vector<1x16x320xbf16> to vector<16x320xbf16>
    %c32 = arith.constant 32 : index
    %c0_19 = arith.constant 0 : index
    %14 = vector.load %arg8[%c32, %c0_19] : memref<144x320xbf16, #tpu.memory_space<vmem>>, vector<16x320xbf16>
    tpu.vector_store %arg8[%c32, %c0_19], %13 {strides = array<i32>} : memref<144x320xbf16, #tpu.memory_space<vmem>>, vector<16x320xbf16>,
    %c0_20 = arith.constant 0 : index
    %c0_21 = arith.constant 0 : index
    %c2_22 = arith.constant 2 : index
    %15 = vector.load %arg2[%c0_20, %c0_21, %c2_22] : memref<1x16x110xbf16, #tpu.memory_space<vmem>>, vector<1x16x80xbf16>
    %16 = vector.shape_cast %15 : vector<1x16x80xbf16> to vector<16x80xbf16>
    %c32_23 = arith.constant 32 : index
    %c0_24 = arith.constant 0 : index
    %17 = vector.load %arg9[%c32_23, %c0_24] : memref<144x80xbf16, #tpu.memory_space<vmem>>, vector<16x80xbf16>
    tpu.vector_store %arg9[%c32_23, %c0_24], %16 {strides = array<i32>} : memref<144x80xbf16, #tpu.memory_space<vmem>>, vector<16x80xbf16>,
    %c0_25 = arith.constant 0 : index
    %c0_26 = arith.constant 0 : index
    %c20 = arith.constant 20 : index
    %18 = vector.load %arg1[%c0_25, %c0_26, %c20] : memref<1x16x380xbf16, #tpu.memory_space<vmem>>, vector<1x16x320xbf16>
    %19 = vector.shape_cast %18 : vector<1x16x320xbf16> to vector<16x320xbf16>
    %c48 = arith.constant 48 : index
    %c0_27 = arith.constant 0 : index
    %20 = vector.load %arg8[%c48, %c0_27] : memref<144x320xbf16, #tpu.memory_space<vmem>>, vector<16x320xbf16>
    tpu.vector_store %arg8[%c48, %c0_27], %19 {strides = array<i32>} : memref<144x320xbf16, #tpu.memory_space<vmem>>, vector<16x320xbf16>,
    %c0_28 = arith.constant 0 : index
    %c0_29 = arith.constant 0 : index
    %c10 = arith.constant 10 : index
    %21 = vector.load %arg2[%c0_28, %c0_29, %c10] : memref<1x16x110xbf16, #tpu.memory_space<vmem>>, vector<1x16x80xbf16>
    %22 = vector.shape_cast %21 : vector<1x16x80xbf16> to vector<16x80xbf16>
    %c48_30 = arith.constant 48 : index
    %c0_31 = arith.constant 0 : index
    %23 = vector.load %arg9[%c48_30, %c0_31] : memref<144x80xbf16, #tpu.memory_space<vmem>>, vector<16x80xbf16>
    tpu.vector_store %arg9[%c48_30, %c0_31], %22 {strides = array<i32>} : memref<144x80xbf16, #tpu.memory_space<vmem>>, vector<16x80xbf16>,
    %c0_32 = arith.constant 0 : index
    %c0_33 = arith.constant 0 : index
    %c21 = arith.constant 21 : index
    %24 = vector.load %arg1[%c0_32, %c0_33, %c21] : memref<1x16x380xbf16, #tpu.memory_space<vmem>>, vector<1x16x320xbf16>
    %25 = vector.shape_cast %24 : vector<1x16x320xbf16> to vector<16x320xbf16>
    %c64 = arith.constant 64 : index
    %c0_34 = arith.constant 0 : index
    %26 = vector.load %arg8[%c64, %c0_34] : memref<144x320xbf16, #tpu.memory_space<vmem>>, vector<16x320xbf16>
    tpu.vector_store %arg8[%c64, %c0_34], %25 {strides = array<i32>} : memref<144x320xbf16, #tpu.memory_space<vmem>>, vector<16x320xbf16>,
    %c0_35 = arith.constant 0 : index
    %c0_36 = arith.constant 0 : index
    %c11 = arith.constant 11 : index
    %27 = vector.load %arg2[%c0_35, %c0_36, %c11] : memref<1x16x110xbf16, #tpu.memory_space<vmem>>, vector<1x16x80xbf16>
    %28 = vector.shape_cast %27 : vector<1x16x80xbf16> to vector<16x80xbf16>
    %c64_37 = arith.constant 64 : index
    %c0_38 = arith.constant 0 : index
    %29 = vector.load %arg9[%c64_37, %c0_38] : memref<144x80xbf16, #tpu.memory_space<vmem>>, vector<16x80xbf16>
    tpu.vector_store %arg9[%c64_37, %c0_38], %28 {strides = array<i32>} : memref<144x80xbf16, #tpu.memory_space<vmem>>, vector<16x80xbf16>,
    %c0_39 = arith.constant 0 : index
    %c0_40 = arith.constant 0 : index
    %c22 = arith.constant 22 : index
    %30 = vector.load %arg1[%c0_39, %c0_40, %c22] : memref<1x16x380xbf16, #tpu.memory_space<vmem>>, vector<1x16x320xbf16>
    %31 = vector.shape_cast %30 : vector<1x16x320xbf16> to vector<16x320xbf16>
    %c80 = arith.constant 80 : index
    %c0_41 = arith.constant 0 : index
    %32 = vector.load %arg8[%c80, %c0_41] : memref<144x320xbf16, #tpu.memory_space<vmem>>, vector<16x320xbf16>
    tpu.vector_store %arg8[%c80, %c0_41], %31 {strides = array<i32>} : memref<144x320xbf16, #tpu.memory_space<vmem>>, vector<16x320xbf16>,
    %c0_42 = arith.constant 0 : index
    %c0_43 = arith.constant 0 : index
    %c12 = arith.constant 12 : index
    %33 = vector.load %arg2[%c0_42, %c0_43, %c12] : memref<1x16x110xbf16, #tpu.memory_space<vmem>>, vector<1x16x80xbf16>
    %34 = vector.shape_cast %33 : vector<1x16x80xbf16> to vector<16x80xbf16>
    %c80_44 = arith.constant 80 : index
    %c0_45 = arith.constant 0 : index
    %35 = vector.load %arg9[%c80_44, %c0_45] : memref<144x80xbf16, #tpu.memory_space<vmem>>, vector<16x80xbf16>
    tpu.vector_store %arg9[%c80_44, %c0_45], %34 {strides = array<i32>} : memref<144x80xbf16, #tpu.memory_space<vmem>>, vector<16x80xbf16>,
    %c0_46 = arith.constant 0 : index
    %c0_47 = arith.constant 0 : index
    %c40 = arith.constant 40 : index
    %36 = vector.load %arg1[%c0_46, %c0_47, %c40] : memref<1x16x380xbf16, #tpu.memory_space<vmem>>, vector<1x16x320xbf16>
    %37 = vector.shape_cast %36 : vector<1x16x320xbf16> to vector<16x320xbf16>
    %c96 = arith.constant 96 : index
    %c0_48 = arith.constant 0 : index
    %38 = vector.load %arg8[%c96, %c0_48] : memref<144x320xbf16, #tpu.memory_space<vmem>>, vector<16x320xbf16>
    tpu.vector_store %arg8[%c96, %c0_48], %37 {strides = array<i32>} : memref<144x320xbf16, #tpu.memory_space<vmem>>, vector<16x320xbf16>,
    %c0_49 = arith.constant 0 : index
    %c0_50 = arith.constant 0 : index
    %c20_51 = arith.constant 20 : index
    %39 = vector.load %arg2[%c0_49, %c0_50, %c20_51] : memref<1x16x110xbf16, #tpu.memory_space<vmem>>, vector<1x16x80xbf16>
    %40 = vector.shape_cast %39 : vector<1x16x80xbf16> to vector<16x80xbf16>
    %c96_52 = arith.constant 96 : index
    %c0_53 = arith.constant 0 : index
    %41 = vector.load %arg9[%c96_52, %c0_53] : memref<144x80xbf16, #tpu.memory_space<vmem>>, vector<16x80xbf16>
    tpu.vector_store %arg9[%c96_52, %c0_53], %40 {strides = array<i32>} : memref<144x80xbf16, #tpu.memory_space<vmem>>, vector<16x80xbf16>,
    %c0_54 = arith.constant 0 : index
    %c0_55 = arith.constant 0 : index
    %c41 = arith.constant 41 : index
    %42 = vector.load %arg1[%c0_54, %c0_55, %c41] : memref<1x16x380xbf16, #tpu.memory_space<vmem>>, vector<1x16x320xbf16>
    %43 = vector.shape_cast %42 : vector<1x16x320xbf16> to vector<16x320xbf16>
    %c112 = arith.constant 112 : index
    %c0_56 = arith.constant 0 : index
    %44 = vector.load %arg8[%c112, %c0_56] : memref<144x320xbf16, #tpu.memory_space<vmem>>, vector<16x320xbf16>
    tpu.vector_store %arg8[%c112, %c0_56], %43 {strides = array<i32>} : memref<144x320xbf16, #tpu.memory_space<vmem>>, vector<16x320xbf16>,
    %c0_57 = arith.constant 0 : index
    %c0_58 = arith.constant 0 : index
    %c21_59 = arith.constant 21 : index
    %45 = vector.load %arg2[%c0_57, %c0_58, %c21_59] : memref<1x16x110xbf16, #tpu.memory_space<vmem>>, vector<1x16x80xbf16>
    %46 = vector.shape_cast %45 : vector<1x16x80xbf16> to vector<16x80xbf16>
    %c112_60 = arith.constant 112 : index
    %c0_61 = arith.constant 0 : index
    %47 = vector.load %arg9[%c112_60, %c0_61] : memref<144x80xbf16, #tpu.memory_space<vmem>>, vector<16x80xbf16>
    tpu.vector_store %arg9[%c112_60, %c0_61], %46 {strides = array<i32>} : memref<144x80xbf16, #tpu.memory_space<vmem>>, vector<16x80xbf16>,
    %c0_62 = arith.constant 0 : index
    %c0_63 = arith.constant 0 : index
    %c42 = arith.constant 42 : index
    %48 = vector.load %arg1[%c0_62, %c0_63, %c42] : memref<1x16x380xbf16, #tpu.memory_space<vmem>>, vector<1x16x320xbf16>
    %49 = vector.shape_cast %48 : vector<1x16x320xbf16> to vector<16x320xbf16>
    %c128 = arith.constant 128 : index
    %c0_64 = arith.constant 0 : index
    %50 = vector.load %arg8[%c128, %c0_64] : memref<144x320xbf16, #tpu.memory_space<vmem>>, vector<16x320xbf16>
    tpu.vector_store %arg8[%c128, %c0_64], %49 {strides = array<i32>} : memref<144x320xbf16, #tpu.memory_space<vmem>>, vector<16x320xbf16>,
    %c0_65 = arith.constant 0 : index
    %c0_66 = arith.constant 0 : index
    %c22_67 = arith.constant 22 : index
    %51 = vector.load %arg2[%c0_65, %c0_66, %c22_67] : memref<1x16x110xbf16, #tpu.memory_space<vmem>>, vector<1x16x80xbf16>
    %52 = vector.shape_cast %51 : vector<1x16x80xbf16> to vector<16x80xbf16>
    %c128_68 = arith.constant 128 : index
    %c0_69 = arith.constant 0 : index
    %53 = vector.load %arg9[%c128_68, %c0_69] : memref<144x80xbf16, #tpu.memory_space<vmem>>, vector<16x80xbf16>
    tpu.vector_store %arg9[%c128_68, %c0_69], %52 {strides = array<i32>} : memref<144x80xbf16, #tpu.memory_space<vmem>>, vector<16x80xbf16>,
    %c0_70 = arith.constant 0 : index
    %c0_71 = arith.constant 0 : index
    %54 = vector.load %arg3[%c0_70, %c0_71] : memref<8x144xbf16, #tpu.memory_space<vmem>>, vector<8x144xbf16>
    %c0_72 = arith.constant 0 : index
    %c0_73 = arith.constant 0 : index
    %55 = vector.load %arg8[%c0_72, %c0_73] : memref<144x320xbf16, #tpu.memory_space<vmem>>, vector<144x320xbf16>
    %cst = arith.constant dense<0.000000e+00> : vector<8x320xf32>
    %56 = tpu.matmul %54, %55, %cst {dimension_numbers = #tpu.dot_dimension_numbers<[1], [0], [0], [1], [0, 0, 1, 1], [], []>} : vector<8x144xbf16>, vector<144x320xbf16>, vector<8x320xf32> -> vector<8x320xf32>
    %c0_74 = arith.constant 0 : index
    %c0_75 = arith.constant 0 : index
    %57 = vector.load %arg4[%c0_74, %c0_75] : memref<8x144xbf16, #tpu.memory_space<vmem>>, vector<8x144xbf16>
    %c0_76 = arith.constant 0 : index
    %c0_77 = arith.constant 0 : index
    %58 = vector.load %arg9[%c0_76, %c0_77] : memref<144x80xbf16, #tpu.memory_space<vmem>>, vector<144x80xbf16>
    %cst_78 = arith.constant dense<0.000000e+00> : vector<8x80xf32>
    %59 = tpu.matmul %57, %58, %cst_78 {dimension_numbers = #tpu.dot_dimension_numbers<[1], [0], [0], [1], [0, 0, 1, 1], [], []>} : vector<8x144xbf16>, vector<144x80xbf16>, vector<8x80xf32> -> vector<8x80xf32>
    %c0_79 = arith.constant 0 : index
    %c0_80 = arith.constant 0 : index
    %60 = vector.load %arg6[%c0_79, %c0_80] : memref<8x1xf32, #tpu.memory_space<vmem>>, vector<8x1xf32>
    %c0_81 = arith.constant 0 : index
    %c0_82 = arith.constant 0 : index
    %61 = vector.load %arg5[%c0_81, %c0_82] : memref<10x20xf32, #tpu.memory_space<vmem>>, vector<10x20xf32>
    %62 = vector.extract_strided_slice %59 {offsets = [0, 0], sizes = [8, 10], strides = [1, 1]} : vector<8x80xf32> to vector<8x10xf32>
    %cst_83 = arith.constant dense<0.000000e+00> : vector<8x20xf32>
    %63 = tpu.matmul %62, %61, %cst_83 {dimension_numbers = #tpu.dot_dimension_numbers<[1], [0], [0], [1], [0, 0, 1, 1], [], []>} : vector<8x10xf32>, vector<10x20xf32>, vector<8x20xf32> -> vector<8x20xf32>
    %64 = vector.extract_strided_slice %56 {offsets = [0, 0], sizes = [8, 20], strides = [1, 1]} : vector<8x320xf32> to vector<8x20xf32>
    %65 = arith.addf %64, %63 : vector<8x20xf32>
    %66 = vector.broadcast %60 : vector<8x1xf32> to vector<8x20xf32>
    %67 = arith.addf %65, %66 : vector<8x20xf32>
    %cst_84 = arith.constant 0.000000e+00 : f32
    %68 = vector.broadcast %cst_84 : f32 to vector<8x20xf32>
    %69 = arith.maximumf %67, %68 : vector<8x20xf32>
    %70 = arith.truncf %69 : vector<8x20xf32> to vector<8x20xbf16>
    %c0_85 = arith.constant 0 : index
    %c0_86 = arith.constant 0 : index
    %c0_87 = arith.constant 0 : index
    %71 = vector.load %arg7[%c0_85, %c0_86, %c0_87] : memref<1x8x320xbf16, #tpu.memory_space<vmem>>, vector<1x8x20xbf16>
    %72 = vector.shape_cast %71 : vector<1x8x20xbf16> to vector<8x20xbf16>
    %73 = vector.shape_cast %70 : vector<8x20xbf16> to vector<1x8x20xbf16>
    tpu.vector_store %arg7[%c0_85, %c0_86, %c0_87], %73 {strides = array<i32>} : memref<1x8x320xbf16, #tpu.memory_space<vmem>>, vector<1x8x20xbf16>,
    %74 = vector.extract_strided_slice %56 {offsets = [0, 20], sizes = [8, 20], strides = [1, 1]} : vector<8x320xf32> to vector<8x20xf32>
    %75 = arith.addf %74, %63 : vector<8x20xf32>
    %76 = vector.broadcast %60 : vector<8x1xf32> to vector<8x20xf32>
    %77 = arith.addf %75, %76 : vector<8x20xf32>
    %cst_88 = arith.constant 0.000000e+00 : f32
    %78 = vector.broadcast %cst_88 : f32 to vector<8x20xf32>
    %79 = arith.maximumf %77, %78 : vector<8x20xf32>
    %80 = arith.truncf %79 : vector<8x20xf32> to vector<8x20xbf16>
    %c0_89 = arith.constant 0 : index
    %c0_90 = arith.constant 0 : index
    %c20_91 = arith.constant 20 : index
    %81 = vector.load %arg7[%c0_89, %c0_90, %c20_91] : memref<1x8x320xbf16, #tpu.memory_space<vmem>>, vector<1x8x20xbf16>
    %82 = vector.shape_cast %81 : vector<1x8x20xbf16> to vector<8x20xbf16>
    %83 = vector.shape_cast %80 : vector<8x20xbf16> to vector<1x8x20xbf16>
    tpu.vector_store %arg7[%c0_89, %c0_90, %c20_91], %83 {strides = array<i32>} : memref<1x8x320xbf16, #tpu.memory_space<vmem>>, vector<1x8x20xbf16>,
    %84 = vector.extract_strided_slice %59 {offsets = [0, 10], sizes = [8, 10], strides = [1, 1]} : vector<8x80xf32> to vector<8x10xf32>
    %cst_92 = arith.constant dense<0.000000e+00> : vector<8x20xf32>
    %85 = tpu.matmul %84, %61, %cst_92 {dimension_numbers = #tpu.dot_dimension_numbers<[1], [0], [0], [1], [0, 0, 1, 1], [], []>} : vector<8x10xf32>, vector<10x20xf32>, vector<8x20xf32> -> vector<8x20xf32>
    %86 = vector.extract_strided_slice %56 {offsets = [0, 40], sizes = [8, 20], strides = [1, 1]} : vector<8x320xf32> to vector<8x20xf32>
    %87 = arith.addf %86, %85 : vector<8x20xf32>
    %88 = vector.broadcast %60 : vector<8x1xf32> to vector<8x20xf32>
    %89 = arith.addf %87, %88 : vector<8x20xf32>
    %cst_93 = arith.constant 0.000000e+00 : f32
    %90 = vector.broadcast %cst_93 : f32 to vector<8x20xf32>
    %91 = arith.maximumf %89, %90 : vector<8x20xf32>
    %92 = arith.truncf %91 : vector<8x20xf32> to vector<8x20xbf16>
    %c0_94 = arith.constant 0 : index
    %c0_95 = arith.constant 0 : index
    %c40_96 = arith.constant 40 : index
    %93 = vector.load %arg7[%c0_94, %c0_95, %c40_96] : memref<1x8x320xbf16, #tpu.memory_space<vmem>>, vector<1x8x20xbf16>
    %94 = vector.shape_cast %93 : vector<1x8x20xbf16> to vector<8x20xbf16>
    %95 = vector.shape_cast %92 : vector<8x20xbf16> to vector<1x8x20xbf16>
    tpu.vector_store %arg7[%c0_94, %c0_95, %c40_96], %95 {strides = array<i32>} : memref<1x8x320xbf16, #tpu.memory_space<vmem>>, vector<1x8x20xbf16>,
    %96 = vector.extract_strided_slice %56 {offsets = [0, 60], sizes = [8, 20], strides = [1, 1]} : vector<8x320xf32> to vector<8x20xf32>
    %97 = arith.addf %96, %85 : vector<8x20xf32>
    %98 = vector.broadcast %60 : vector<8x1xf32> to vector<8x20xf32>
    %99 = arith.addf %97, %98 : vector<8x20xf32>
    %cst_97 = arith.constant 0.000000e+00 : f32
    %100 = vector.broadcast %cst_97 : f32 to vector<8x20xf32>
    %101 = arith.maximumf %99, %100 : vector<8x20xf32>
    %102 = arith.truncf %101 : vector<8x20xf32> to vector<8x20xbf16>
    %c0_98 = arith.constant 0 : index
    %c0_99 = arith.constant 0 : index
    %c60 = arith.constant 60 : index
    %103 = vector.load %arg7[%c0_98, %c0_99, %c60] : memref<1x8x320xbf16, #tpu.memory_space<vmem>>, vector<1x8x20xbf16>
    %104 = vector.shape_cast %103 : vector<1x8x20xbf16> to vector<8x20xbf16>
    %105 = vector.shape_cast %102 : vector<8x20xbf16> to vector<1x8x20xbf16>
    tpu.vector_store %arg7[%c0_98, %c0_99, %c60], %105 {strides = array<i32>} : memref<1x8x320xbf16, #tpu.memory_space<vmem>>, vector<1x8x20xbf16>,
    %106 = vector.extract_strided_slice %59 {offsets = [0, 20], sizes = [8, 10], strides = [1, 1]} : vector<8x80xf32> to vector<8x10xf32>
    %cst_100 = arith.constant dense<0.000000e+00> : vector<8x20xf32>
    %107 = tpu.matmul %106, %61, %cst_100 {dimension_numbers = #tpu.dot_dimension_numbers<[1], [0], [0], [1], [0, 0, 1, 1], [], []>} : vector<8x10xf32>, vector<10x20xf32>, vector<8x20xf32> -> vector<8x20xf32>
    %108 = vector.extract_strided_slice %56 {offsets = [0, 80], sizes = [8, 20], strides = [1, 1]} : vector<8x320xf32> to vector<8x20xf32>
    %109 = arith.addf %108, %107 : vector<8x20xf32>
    %110 = vector.broadcast %60 : vector<8x1xf32> to vector<8x20xf32>
    %111 = arith.addf %109, %110 : vector<8x20xf32>
    %cst_101 = arith.constant 0.000000e+00 : f32
    %112 = vector.broadcast %cst_101 : f32 to vector<8x20xf32>
    %113 = arith.maximumf %111, %112 : vector<8x20xf32>
    %114 = arith.truncf %113 : vector<8x20xf32> to vector<8x20xbf16>
    %c0_102 = arith.constant 0 : index
    %c0_103 = arith.constant 0 : index
    %c80_104 = arith.constant 80 : index
    %115 = vector.load %arg7[%c0_102, %c0_103, %c80_104] : memref<1x8x320xbf16, #tpu.memory_space<vmem>>, vector<1x8x20xbf16>
    %116 = vector.shape_cast %115 : vector<1x8x20xbf16> to vector<8x20xbf16>
    %117 = vector.shape_cast %114 : vector<8x20xbf16> to vector<1x8x20xbf16>
    tpu.vector_store %arg7[%c0_102, %c0_103, %c80_104], %117 {strides = array<i32>} : memref<1x8x320xbf16, #tpu.memory_space<vmem>>, vector<1x8x20xbf16>,
    %118 = vector.extract_strided_slice %56 {offsets = [0, 100], sizes = [8, 20], strides = [1, 1]} : vector<8x320xf32> to vector<8x20xf32>
    %119 = arith.addf %118, %107 : vector<8x20xf32>
    %120 = vector.broadcast %60 : vector<8x1xf32> to vector<8x20xf32>
    %121 = arith.addf %119, %120 : vector<8x20xf32>
    %cst_105 = arith.constant 0.000000e+00 : f32
    %122 = vector.broadcast %cst_105 : f32 to vector<8x20xf32>
    %123 = arith.maximumf %121, %122 : vector<8x20xf32>
    %124 = arith.truncf %123 : vector<8x20xf32> to vector<8x20xbf16>
    %c0_106 = arith.constant 0 : index
    %c0_107 = arith.constant 0 : index
    %c100 = arith.constant 100 : index
    %125 = vector.load %arg7[%c0_106, %c0_107, %c100] : memref<1x8x320xbf16, #tpu.memory_space<vmem>>, vector<1x8x20xbf16>
    %126 = vector.shape_cast %125 : vector<1x8x20xbf16> to vector<8x20xbf16>
    %127 = vector.shape_cast %124 : vector<8x20xbf16> to vector<1x8x20xbf16>
    tpu.vector_store %arg7[%c0_106, %c0_107, %c100], %127 {strides = array<i32>} : memref<1x8x320xbf16, #tpu.memory_space<vmem>>, vector<1x8x20xbf16>,
    %128 = vector.extract_strided_slice %59 {offsets = [0, 30], sizes = [8, 10], strides = [1, 1]} : vector<8x80xf32> to vector<8x10xf32>
    %cst_108 = arith.constant dense<0.000000e+00> : vector<8x20xf32>
    %129 = tpu.matmul %128, %61, %cst_108 {dimension_numbers = #tpu.dot_dimension_numbers<[1], [0], [0], [1], [0, 0, 1, 1], [], []>} : vector<8x10xf32>, vector<10x20xf32>, vector<8x20xf32> -> vector<8x20xf32>
    %130 = vector.extract_strided_slice %56 {offsets = [0, 120], sizes = [8, 20], strides = [1, 1]} : vector<8x320xf32> to vector<8x20xf32>
    %131 = arith.addf %130, %129 : vector<8x20xf32>
    %132 = vector.broadcast %60 : vector<8x1xf32> to vector<8x20xf32>
    %133 = arith.addf %131, %132 : vector<8x20xf32>
    %cst_109 = arith.constant 0.000000e+00 : f32
    %134 = vector.broadcast %cst_109 : f32 to vector<8x20xf32>
    %135 = arith.maximumf %133, %134 : vector<8x20xf32>
    %136 = arith.truncf %135 : vector<8x20xf32> to vector<8x20xbf16>
    %c0_110 = arith.constant 0 : index
    %c0_111 = arith.constant 0 : index
    %c120 = arith.constant 120 : index
    %137 = vector.load %arg7[%c0_110, %c0_111, %c120] : memref<1x8x320xbf16, #tpu.memory_space<vmem>>, vector<1x8x20xbf16>
    %138 = vector.shape_cast %137 : vector<1x8x20xbf16> to vector<8x20xbf16>
    %139 = vector.shape_cast %136 : vector<8x20xbf16> to vector<1x8x20xbf16>
    tpu.vector_store %arg7[%c0_110, %c0_111, %c120], %139 {strides = array<i32>} : memref<1x8x320xbf16, #tpu.memory_space<vmem>>, vector<1x8x20xbf16>,
    %140 = vector.extract_strided_slice %56 {offsets = [0, 140], sizes = [8, 20], strides = [1, 1]} : vector<8x320xf32> to vector<8x20xf32>
    %141 = arith.addf %140, %129 : vector<8x20xf32>
    %142 = vector.broadcast %60 : vector<8x1xf32> to vector<8x20xf32>
    %143 = arith.addf %141, %142 : vector<8x20xf32>
    %cst_112 = arith.constant 0.000000e+00 : f32
    %144 = vector.broadcast %cst_112 : f32 to vector<8x20xf32>
    %145 = arith.maximumf %143, %144 : vector<8x20xf32>
    %146 = arith.truncf %145 : vector<8x20xf32> to vector<8x20xbf16>
    %c0_113 = arith.constant 0 : index
    %c0_114 = arith.constant 0 : index
    %c140 = arith.constant 140 : index
    %147 = vector.load %arg7[%c0_113, %c0_114, %c140] : memref<1x8x320xbf16, #tpu.memory_space<vmem>>, vector<1x8x20xbf16>
    %148 = vector.shape_cast %147 : vector<1x8x20xbf16> to vector<8x20xbf16>
    %149 = vector.shape_cast %146 : vector<8x20xbf16> to vector<1x8x20xbf16>
    tpu.vector_store %arg7[%c0_113, %c0_114, %c140], %149 {strides = array<i32>} : memref<1x8x320xbf16, #tpu.memory_space<vmem>>, vector<1x8x20xbf16>,
    %150 = vector.extract_strided_slice %59 {offsets = [0, 40], sizes = [8, 10], strides = [1, 1]} : vector<8x80xf32> to vector<8x10xf32>
    %cst_115 = arith.constant dense<0.000000e+00> : vector<8x20xf32>
    %151 = tpu.matmul %150, %61, %cst_115 {dimension_numbers = #tpu.dot_dimension_numbers<[1], [0], [0], [1], [0, 0, 1, 1], [], []>} : vector<8x10xf32>, vector<10x20xf32>, vector<8x20xf32> -> vector<8x20xf32>
    %152 = vector.extract_strided_slice %56 {offsets = [0, 160], sizes = [8, 20], strides = [1, 1]} : vector<8x320xf32> to vector<8x20xf32>
    %153 = arith.addf %152, %151 : vector<8x20xf32>
    %154 = vector.broadcast %60 : vector<8x1xf32> to vector<8x20xf32>
    %155 = arith.addf %153, %154 : vector<8x20xf32>
    %cst_116 = arith.constant 0.000000e+00 : f32
    %156 = vector.broadcast %cst_116 : f32 to vector<8x20xf32>
    %157 = arith.maximumf %155, %156 : vector<8x20xf32>
    %158 = arith.truncf %157 : vector<8x20xf32> to vector<8x20xbf16>
    %c0_117 = arith.constant 0 : index
    %c0_118 = arith.constant 0 : index
    %c160 = arith.constant 160 : index
    %159 = vector.load %arg7[%c0_117, %c0_118, %c160] : memref<1x8x320xbf16, #tpu.memory_space<vmem>>, vector<1x8x20xbf16>
    %160 = vector.shape_cast %159 : vector<1x8x20xbf16> to vector<8x20xbf16>
    %161 = vector.shape_cast %158 : vector<8x20xbf16> to vector<1x8x20xbf16>
    tpu.vector_store %arg7[%c0_117, %c0_118, %c160], %161 {strides = array<i32>} : memref<1x8x320xbf16, #tpu.memory_space<vmem>>, vector<1x8x20xbf16>,
    %162 = vector.extract_strided_slice %56 {offsets = [0, 180], sizes = [8, 20], strides = [1, 1]} : vector<8x320xf32> to vector<8x20xf32>
    %163 = arith.addf %162, %151 : vector<8x20xf32>
    %164 = vector.broadcast %60 : vector<8x1xf32> to vector<8x20xf32>
    %165 = arith.addf %163, %164 : vector<8x20xf32>
    %cst_119 = arith.constant 0.000000e+00 : f32
    %166 = vector.broadcast %cst_119 : f32 to vector<8x20xf32>
    %167 = arith.maximumf %165, %166 : vector<8x20xf32>
    %168 = arith.truncf %167 : vector<8x20xf32> to vector<8x20xbf16>
    %c0_120 = arith.constant 0 : index
    %c0_121 = arith.constant 0 : index
    %c180 = arith.constant 180 : index
    %169 = vector.load %arg7[%c0_120, %c0_121, %c180] : memref<1x8x320xbf16, #tpu.memory_space<vmem>>, vector<1x8x20xbf16>
    %170 = vector.shape_cast %169 : vector<1x8x20xbf16> to vector<8x20xbf16>
    %171 = vector.shape_cast %168 : vector<8x20xbf16> to vector<1x8x20xbf16>
    tpu.vector_store %arg7[%c0_120, %c0_121, %c180], %171 {strides = array<i32>} : memref<1x8x320xbf16, #tpu.memory_space<vmem>>, vector<1x8x20xbf16>,
    %172 = vector.extract_strided_slice %59 {offsets = [0, 50], sizes = [8, 10], strides = [1, 1]} : vector<8x80xf32> to vector<8x10xf32>
    %cst_122 = arith.constant dense<0.000000e+00> : vector<8x20xf32>
    %173 = tpu.matmul %172, %61, %cst_122 {dimension_numbers = #tpu.dot_dimension_numbers<[1], [0], [0], [1], [0, 0, 1, 1], [], []>} : vector<8x10xf32>, vector<10x20xf32>, vector<8x20xf32> -> vector<8x20xf32>
    %174 = vector.extract_strided_slice %56 {offsets = [0, 200], sizes = [8, 20], strides = [1, 1]} : vector<8x320xf32> to vector<8x20xf32>
    %175 = arith.addf %174, %173 : vector<8x20xf32>
    %176 = vector.broadcast %60 : vector<8x1xf32> to vector<8x20xf32>
    %177 = arith.addf %175, %176 : vector<8x20xf32>
    %cst_123 = arith.constant 0.000000e+00 : f32
    %178 = vector.broadcast %cst_123 : f32 to vector<8x20xf32>
    %179 = arith.maximumf %177, %178 : vector<8x20xf32>
    %180 = arith.truncf %179 : vector<8x20xf32> to vector<8x20xbf16>
    %c0_124 = arith.constant 0 : index
    %c0_125 = arith.constant 0 : index
    %c200 = arith.constant 200 : index
    %181 = vector.load %arg7[%c0_124, %c0_125, %c200] : memref<1x8x320xbf16, #tpu.memory_space<vmem>>, vector<1x8x20xbf16>
    %182 = vector.shape_cast %181 : vector<1x8x20xbf16> to vector<8x20xbf16>
    %183 = vector.shape_cast %180 : vector<8x20xbf16> to vector<1x8x20xbf16>
    tpu.vector_store %arg7[%c0_124, %c0_125, %c200], %183 {strides = array<i32>} : memref<1x8x320xbf16, #tpu.memory_space<vmem>>, vector<1x8x20xbf16>,
    %184 = vector.extract_strided_slice %56 {offsets = [0, 220], sizes = [8, 20], strides = [1, 1]} : vector<8x320xf32> to vector<8x20xf32>
    %185 = arith.addf %184, %173 : vector<8x20xf32>
    %186 = vector.broadcast %60 : vector<8x1xf32> to vector<8x20xf32>
    %187 = arith.addf %185, %186 : vector<8x20xf32>
    %cst_126 = arith.constant 0.000000e+00 : f32
    %188 = vector.broadcast %cst_126 : f32 to vector<8x20xf32>
    %189 = arith.maximumf %187, %188 : vector<8x20xf32>
    %190 = arith.truncf %189 : vector<8x20xf32> to vector<8x20xbf16>
    %c0_127 = arith.constant 0 : index
    %c0_128 = arith.constant 0 : index
    %c220 = arith.constant 220 : index
    %191 = vector.load %arg7[%c0_127, %c0_128, %c220] : memref<1x8x320xbf16, #tpu.memory_space<vmem>>, vector<1x8x20xbf16>
    %192 = vector.shape_cast %191 : vector<1x8x20xbf16> to vector<8x20xbf16>
    %193 = vector.shape_cast %190 : vector<8x20xbf16> to vector<1x8x20xbf16>
    tpu.vector_store %arg7[%c0_127, %c0_128, %c220], %193 {strides = array<i32>} : memref<1x8x320xbf16, #tpu.memory_space<vmem>>, vector<1x8x20xbf16>,
    %194 = vector.extract_strided_slice %59 {offsets = [0, 60], sizes = [8, 10], strides = [1, 1]} : vector<8x80xf32> to vector<8x10xf32>
    %cst_129 = arith.constant dense<0.000000e+00> : vector<8x20xf32>
    %195 = tpu.matmul %194, %61, %cst_129 {dimension_numbers = #tpu.dot_dimension_numbers<[1], [0], [0], [1], [0, 0, 1, 1], [], []>} : vector<8x10xf32>, vector<10x20xf32>, vector<8x20xf32> -> vector<8x20xf32>
    %196 = vector.extract_strided_slice %56 {offsets = [0, 240], sizes = [8, 20], strides = [1, 1]} : vector<8x320xf32> to vector<8x20xf32>
    %197 = arith.addf %196, %195 : vector<8x20xf32>
    %198 = vector.broadcast %60 : vector<8x1xf32> to vector<8x20xf32>
    %199 = arith.addf %197, %198 : vector<8x20xf32>
    %cst_130 = arith.constant 0.000000e+00 : f32
    %200 = vector.broadcast %cst_130 : f32 to vector<8x20xf32>
    %201 = arith.maximumf %199, %200 : vector<8x20xf32>
    %202 = arith.truncf %201 : vector<8x20xf32> to vector<8x20xbf16>
    %c0_131 = arith.constant 0 : index
    %c0_132 = arith.constant 0 : index
    %c240 = arith.constant 240 : index
    %203 = vector.load %arg7[%c0_131, %c0_132, %c240] : memref<1x8x320xbf16, #tpu.memory_space<vmem>>, vector<1x8x20xbf16>
    %204 = vector.shape_cast %203 : vector<1x8x20xbf16> to vector<8x20xbf16>
    %205 = vector.shape_cast %202 : vector<8x20xbf16> to vector<1x8x20xbf16>
    tpu.vector_store %arg7[%c0_131, %c0_132, %c240], %205 {strides = array<i32>} : memref<1x8x320xbf16, #tpu.memory_space<vmem>>, vector<1x8x20xbf16>,
    %206 = vector.extract_strided_slice %56 {offsets = [0, 260], sizes = [8, 20], strides = [1, 1]} : vector<8x320xf32> to vector<8x20xf32>
    %207 = arith.addf %206, %195 : vector<8x20xf32>
    %208 = vector.broadcast %60 : vector<8x1xf32> to vector<8x20xf32>
    %209 = arith.addf %207, %208 : vector<8x20xf32>
    %cst_133 = arith.constant 0.000000e+00 : f32
    %210 = vector.broadcast %cst_133 : f32 to vector<8x20xf32>
    %211 = arith.maximumf %209, %210 : vector<8x20xf32>
    %212 = arith.truncf %211 : vector<8x20xf32> to vector<8x20xbf16>
    %c0_134 = arith.constant 0 : index
    %c0_135 = arith.constant 0 : index
    %c260 = arith.constant 260 : index
    %213 = vector.load %arg7[%c0_134, %c0_135, %c260] : memref<1x8x320xbf16, #tpu.memory_space<vmem>>, vector<1x8x20xbf16>
    %214 = vector.shape_cast %213 : vector<1x8x20xbf16> to vector<8x20xbf16>
    %215 = vector.shape_cast %212 : vector<8x20xbf16> to vector<1x8x20xbf16>
    tpu.vector_store %arg7[%c0_134, %c0_135, %c260], %215 {strides = array<i32>} : memref<1x8x320xbf16, #tpu.memory_space<vmem>>, vector<1x8x20xbf16>,
    %216 = vector.extract_strided_slice %59 {offsets = [0, 70], sizes = [8, 10], strides = [1, 1]} : vector<8x80xf32> to vector<8x10xf32>
    %cst_136 = arith.constant dense<0.000000e+00> : vector<8x20xf32>
    %217 = tpu.matmul %216, %61, %cst_136 {dimension_numbers = #tpu.dot_dimension_numbers<[1], [0], [0], [1], [0, 0, 1, 1], [], []>} : vector<8x10xf32>, vector<10x20xf32>, vector<8x20xf32> -> vector<8x20xf32>
    %218 = vector.extract_strided_slice %56 {offsets = [0, 280], sizes = [8, 20], strides = [1, 1]} : vector<8x320xf32> to vector<8x20xf32>
    %219 = arith.addf %218, %217 : vector<8x20xf32>
    %220 = vector.broadcast %60 : vector<8x1xf32> to vector<8x20xf32>
    %221 = arith.addf %219, %220 : vector<8x20xf32>
    %cst_137 = arith.constant 0.000000e+00 : f32
    %222 = vector.broadcast %cst_137 : f32 to vector<8x20xf32>
    %223 = arith.maximumf %221, %222 : vector<8x20xf32>
    %224 = arith.truncf %223 : vector<8x20xf32> to vector<8x20xbf16>
    %c0_138 = arith.constant 0 : index
    %c0_139 = arith.constant 0 : index
    %c280 = arith.constant 280 : index
    %225 = vector.load %arg7[%c0_138, %c0_139, %c280] : memref<1x8x320xbf16, #tpu.memory_space<vmem>>, vector<1x8x20xbf16>
    %226 = vector.shape_cast %225 : vector<1x8x20xbf16> to vector<8x20xbf16>
    %227 = vector.shape_cast %224 : vector<8x20xbf16> to vector<1x8x20xbf16>
    tpu.vector_store %arg7[%c0_138, %c0_139, %c280], %227 {strides = array<i32>} : memref<1x8x320xbf16, #tpu.memory_space<vmem>>, vector<1x8x20xbf16>,
    %228 = vector.extract_strided_slice %56 {offsets = [0, 300], sizes = [8, 20], strides = [1, 1]} : vector<8x320xf32> to vector<8x20xf32>
    %229 = arith.addf %228, %217 : vector<8x20xf32>
    %230 = vector.broadcast %60 : vector<8x1xf32> to vector<8x20xf32>
    %231 = arith.addf %229, %230 : vector<8x20xf32>
    %cst_140 = arith.constant 0.000000e+00 : f32
    %232 = vector.broadcast %cst_140 : f32 to vector<8x20xf32>
    %233 = arith.maximumf %231, %232 : vector<8x20xf32>
    %234 = arith.truncf %233 : vector<8x20xf32> to vector<8x20xbf16>
    %c0_141 = arith.constant 0 : index
    %c0_142 = arith.constant 0 : index
    %c300 = arith.constant 300 : index
    %235 = vector.load %arg7[%c0_141, %c0_142, %c300] : memref<1x8x320xbf16, #tpu.memory_space<vmem>>, vector<1x8x20xbf16>
    %236 = vector.shape_cast %235 : vector<1x8x20xbf16> to vector<8x20xbf16>
    %237 = vector.shape_cast %234 : vector<8x20xbf16> to vector<1x8x20xbf16>
    tpu.vector_store %arg7[%c0_141, %c0_142, %c300], %237 {strides = array<i32>} : memref<1x8x320xbf16, #tpu.memory_space<vmem>>, vector<1x8x20xbf16>,
    return
  }
  func.func @transform_0(%arg0: i32) -> (i32, i32, i32) {
    %c0_i32 = arith.constant 0 : i32
    %c0_i32_0 = arith.constant 0 : i32
    %c0_i32_1 = arith.constant 0 : i32
    return %arg0, %c0_i32, %c0_i32_0 : i32, i32, i32
  }
  func.func @transform_1(%arg0: i32) -> (i32, i32, i32) {
    %c0_i32 = arith.constant 0 : i32
    %c0_i32_0 = arith.constant 0 : i32
    %c0_i32_1 = arith.constant 0 : i32
    return %arg0, %c0_i32, %c0_i32_0 : i32, i32, i32
  }
  func.func @transform_2(%arg0: i32) -> (i32, i32) {
    %c0_i32 = arith.constant 0 : i32
    %c0_i32_0 = arith.constant 0 : i32
    %c0_i32_1 = arith.constant 0 : i32
    return %c0_i32, %c0_i32_0 : i32, i32
  }
  func.func @transform_3(%arg0: i32) -> (i32, i32) {
    %c0_i32 = arith.constant 0 : i32
    %c0_i32_0 = arith.constant 0 : i32
    %c0_i32_1 = arith.constant 0 : i32
    return %c0_i32, %c0_i32_0 : i32, i32
  }
  func.func @transform_4(%arg0: i32) -> (i32, i32) {
    %c0_i32 = arith.constant 0 : i32
    %c0_i32_0 = arith.constant 0 : i32
    %c0_i32_1 = arith.constant 0 : i32
    return %c0_i32, %c0_i32_0 : i32, i32
  }
  func.func @transform_5(%arg0: i32) -> (i32, i32) {
    %c0_i32 = arith.constant 0 : i32
    %c0_i32_0 = arith.constant 0 : i32
    %c0_i32_1 = arith.constant 0 : i32
    return %c0_i32, %c0_i32_0 : i32, i32
  }
  func.func @transform_6(%arg0: i32) -> (i32, i32, i32) {
    %c0_i32 = arith.constant 0 : i32
    %c0_i32_0 = arith.constant 0 : i32
    %c0_i32_1 = arith.constant 0 : i32
    return %arg0, %c0_i32, %c0_i32_0 : i32, i32, i32
  }
}

</mosaic_0001>

<llo_original>
// kernel: oct_conv_out_block.1
$region0: #{oct_conv_out_block.1}
  #allocation0 [shape = 'u32[]', space=smem, size = 0x4, offset = 0x4, fixed_abs, tag = 'smem constant byte address 0x4 - core index']
  #allocation1 [shape = 'u32[144,128]{1,0:T(1,128)}', space=vmem, size = 0x12000, scoped, tag = 'internal scratch']
  #allocation2 [shape = 'bf16[144,320]{1,0:T(16,128)(2,1)}', space=vmem, size = 0x1b000, scoped, tag = 'scratch operand']
  #allocation3 [shape = 'bf16[144,80]{1,0:T(16,128)(2,1)}', space=vmem, size = 0x9000, scoped, tag = 'scratch operand']
  %s0 = inlined_call_operand.vmem [shape: bf16[2,16,380], index: 0, kind: input, shape index: {}]
  %s1 = inlined_call_operand.vmem [shape: bf16[2,16,110], index: 1, kind: input, shape index: {}]
  %s2 = inlined_call_operand.vmem [shape: bf16[8,144], index: 2, kind: input, shape index: {}]
  %s3 = inlined_call_operand.vmem [shape: bf16[8,144], index: 3, kind: input, shape index: {}]
  %s4 = inlined_call_operand.vmem [shape: f32[10,20], index: 4, kind: input, shape index: {}]
  %s5 = inlined_call_operand.vmem [shape: f32[8,1], index: 5, kind: input, shape index: {}]
  %s6 = inlined_call_operand.vmem [shape: bf16[2,8,320], index: 6, kind: output, shape index: {}]
  %s7 = sld [smem:[#allocation0]]
  $region57: #{oct_conv_out_block.1} parent=0
    _
  %s9 = ssub.s32 1, %s7
  %s10 = scalar_select 0, %s9, %s7
  loop: start=0, step=1, limit=4
  $region2: #{oct_conv_out_block.1} parent=0 // loop_pre_header
    _
  $region3: #{oct_conv_out_block.1} parent=0 // loop_header
    %s12 = sphi 0, %s16
    %p13 = scmp.ge.s32.totalorder %s12, 4
    %s22 = sphi 0, %s24
    %s25 = sphi 0, %s22
    %s26 = sphi 0, %s25
    %s42 = sphi 0, %s26
    %s48 = sphi 0, %s50
    %s51 = sphi 0, %s48
    %s52 = sphi 0, %s51
    %s68 = sphi 0, %s52
    %s72 = sphi 0, %s72
    %s74 = sphi 0, %s72
    %s75 = sphi 0, %s74
    %s89 = sphi 0, %s75
    %s93 = sphi 0, %s93
    %s95 = sphi 0, %s93
    %s96 = sphi 0, %s95
    %s110 = sphi 0, %s96
    %s114 = sphi 0, %s114
    %s116 = sphi 0, %s114
    %s117 = sphi 0, %s116
    %s131 = sphi 0, %s117
    %s135 = sphi 0, %s135
    %s137 = sphi 0, %s135
    %s138 = sphi 0, %s137
    %s152 = sphi 0, %s138
    %s158 = sphi 0, %s160
    %s161 = sphi 0, %s158
    %s162 = sphi 0, %s161
    %s178 = sphi 0, %s162
  $region4: #{oct_conv_out_block.1} parent=0 // loop_header_branch
    %15 = sbr.rel (%p13) target = $region8
  $region5: #{oct_conv_out_block.1} parent=0 // loop_body
    %s17 = ssub.s32 %s12, 1
    %s18 = ssub.s32 %s12, 2
    %s19 = sadd.s32 %s12, 1
    %s20 = ssub.s32 %s12, %s19
    %p21 = scmp.eq.s32.totalorder %s20, 0
    %s23 = sadd.s32 %s22, 1
    %s24 = scalar_select %p21, %s22, %s23
    %p27 = pneg %p21
    %p28 = scmp.eq.s32.totalorder %s12, 1
    %p29 = por %p27, %p28
    %p30 = scmp.ne.s32.totalorder %s22, %s25
    %p31 = scmp.eq.s32.totalorder %s12, 0
    %p32 = por %p30, %p31
    %p33 = scmp.ne.s32.totalorder %s22, %s25
    %p34 = scmp.eq.s32.totalorder %s17, 1
    %p35 = por %p33, %p34
    %p36 = scmp.ne.s32.totalorder %s25, %s26
    %p37 = scmp.eq.s32.totalorder %s17, 0
    %p38 = por %p36, %p37
    %p39 = scmp.ne.s32.totalorder %s25, %s26
    %p40 = scmp.eq.s32.totalorder %s18, 1
    %p41 = por %p39, %p40
    %p43 = scmp.ne.s32.totalorder %s26, %s42
    %p44 = scmp.eq.s32.totalorder %s18, 0
    %p45 = por %p43, %p44
    %s46 = ssub.s32 %s12, %s19
    %p47 = scmp.eq.s32.totalorder %s46, 0
    %s49 = sadd.s32 %s48, 1
    %s50 = scalar_select %p47, %s48, %s49
    %p53 = pneg %p47
    %p54 = scmp.eq.s32.totalorder %s12, 1
    %p55 = por %p53, %p54
    %p56 = scmp.ne.s32.totalorder %s48, %s51
    %p57 = scmp.eq.s32.totalorder %s12, 0
    %p58 = por %p56, %p57
    %p59 = scmp.ne.s32.totalorder %s48, %s51
    %p60 = scmp.eq.s32.totalorder %s17, 1
    %p61 = por %p59, %p60
    %p62 = scmp.ne.s32.totalorder %s51, %s52
    %p63 = scmp.eq.s32.totalorder %s17, 0
    %p64 = por %p62, %p63
    %p65 = scmp.ne.s32.totalorder %s51, %s52
    %p66 = scmp.eq.s32.totalorder %s18, 1
    %p67 = por %p65, %p66
    %p69 = scmp.ne.s32.totalorder %s52, %s68
    %p70 = scmp.eq.s32.totalorder %s18, 0
    %p71 = por %p69, %p70
    %s73 = sadd.s32 %s72, 1
    %p76 = scmp.eq.s32.totalorder %s12, 1
    %p77 = scmp.ne.s32.totalorder %s72, %s74
    %p78 = scmp.eq.s32.totalorder %s12, 0
    %p79 = por %p77, %p78
    %p80 = scmp.ne.s32.totalorder %s72, %s74
    %p81 = scmp.eq.s32.totalorder %s17, 1
    %p82 = por %p80, %p81
    %p83 = scmp.ne.s32.totalorder %s74, %s75
    %p84 = scmp.eq.s32.totalorder %s17, 0
    %p85 = por %p83, %p84
    %p86 = scmp.ne.s32.totalorder %s74, %s75
    %p87 = scmp.eq.s32.totalorder %s18, 1
    %p88 = por %p86, %p87
    %p90 = scmp.ne.s32.totalorder %s75, %s89
    %p91 = scmp.eq.s32.totalorder %s18, 0
    %p92 = por %p90, %p91
    %s94 = sadd.s32 %s93, 1
    %p97 = scmp.eq.s32.totalorder %s12, 1
    %p98 = scmp.ne.s32.totalorder %s93, %s95
    %p99 = scmp.eq.s32.totalorder %s12, 0
    %p100 = por %p98, %p99
    %p101 = scmp.ne.s32.totalorder %s93, %s95
    %p102 = scmp.eq.s32.totalorder %s17, 1
    %p103 = por %p101, %p102
    %p104 = scmp.ne.s32.totalorder %s95, %s96
    %p105 = scmp.eq.s32.totalorder %s17, 0
    %p106 = por %p104, %p105
    %p107 = scmp.ne.s32.totalorder %s95, %s96
    %p108 = scmp.eq.s32.totalorder %s18, 1
    %p109 = por %p107, %p108
    %p111 = scmp.ne.s32.totalorder %s96, %s110
    %p112 = scmp.eq.s32.totalorder %s18, 0
    %p113 = por %p111, %p112
    %s115 = sadd.s32 %s114, 1
    %p118 = scmp.eq.s32.totalorder %s12, 1
    %p119 = scmp.ne.s32.totalorder %s114, %s116
    %p120 = scmp.eq.s32.totalorder %s12, 0
    %p121 = por %p119, %p120
    %p122 = scmp.ne.s32.totalorder %s114, %s116
    %p123 = scmp.eq.s32.totalorder %s17, 1
    %p124 = por %p122, %p123
    %p125 = scmp.ne.s32.totalorder %s116, %s117
    %p126 = scmp.eq.s32.totalorder %s17, 0
    %p127 = por %p125, %p126
    %p128 = scmp.ne.s32.totalorder %s116, %s117
    %p129 = scmp.eq.s32.totalorder %s18, 1
    %p130 = por %p128, %p129
    %p132 = scmp.ne.s32.totalorder %s117, %s131
    %p133 = scmp.eq.s32.totalorder %s18, 0
    %p134 = por %p132, %p133
    %s136 = sadd.s32 %s135, 1
    %p139 = scmp.eq.s32.totalorder %s12, 1
    %p140 = scmp.ne.s32.totalorder %s135, %s137
    %p141 = scmp.eq.s32.totalorder %s12, 0
    %p142 = por %p140, %p141
    %p143 = scmp.ne.s32.totalorder %s135, %s137
    %p144 = scmp.eq.s32.totalorder %s17, 1
    %p145 = por %p143, %p144
    %p146 = scmp.ne.s32.totalorder %s137, %s138
    %p147 = scmp.eq.s32.totalorder %s17, 0
    %p148 = por %p146, %p147
    %p149 = scmp.ne.s32.totalorder %s137, %s138
    %p150 = scmp.eq.s32.totalorder %s18, 1
    %p151 = por %p149, %p150
    %p153 = scmp.ne.s32.totalorder %s138, %s152
    %p154 = scmp.eq.s32.totalorder %s18, 0
    %p155 = por %p153, %p154
    %s156 = ssub.s32 %s12, %s19
    %p157 = scmp.eq.s32.totalorder %s156, 0
    %s159 = sadd.s32 %s158, 1
    %s160 = scalar_select %p157, %s158, %s159
    %p163 = pneg %p157
    %p164 = scmp.eq.s32.totalorder %s12, 1
    %p165 = por %p163, %p164
    %p166 = scmp.ne.s32.totalorder %s158, %s161
    %p167 = scmp.eq.s32.totalorder %s12, 0
    %p168 = por %p166, %p167
    %p169 = scmp.ne.s32.totalorder %s158, %s161
    %p170 = scmp.eq.s32.totalorder %s17, 1
    %p171 = por %p169, %p170
    %p172 = scmp.ne.s32.totalorder %s161, %s162
    %p173 = scmp.eq.s32.totalorder %s17, 0
    %p174 = por %p172, %p173
    %p175 = scmp.ne.s32.totalorder %s161, %s162
    %p176 = scmp.eq.s32.totalorder %s18, 1
    %p177 = por %p175, %p176
    %p179 = scmp.ne.s32.totalorder %s162, %s178
    %p180 = scmp.eq.s32.totalorder %s18, 0
    %p181 = por %p179, %p180
    %p182 = scmp.le.s32.totalorder 1, %s12
    %p183 = scmp.lt.s32.totalorder %s12, 3
    %p184 = pnand %p182, %p183
    %p185 = pneg %p184
    // Predicated region
    $region9: #{oct_conv_out_block.1} parent=5 // pred_check
      _
    $region10: #{oct_conv_out_block.1} parent=5 // pred_check_branch
      %187 = sbr.rel (%p184) target = $region12
    $region11: #{oct_conv_out_block.1} parent=5 // pred_region
      %s188 = ssub.s32 %s12, 1
      // Predicated region
      $region13: #{oct_conv_out_block.1} parent=11 // pred_check
        %p189 = pneg %p85
      $region14: #{oct_conv_out_block.1} parent=11 // pred_check_branch
        %191 = sbr.rel (%p189) target = $region16
      $region15: #{oct_conv_out_block.1} parent=11 // pred_region
        _
      $region16: #{oct_conv_out_block.1} parent=11 // pred_fallthru
        _
      // Predicated region
      $region17: #{oct_conv_out_block.1} parent=11 // pred_check
        %p192 = pneg %p106
      $region18: #{oct_conv_out_block.1} parent=11 // pred_check_branch
        %194 = sbr.rel (%p192) target = $region20
      $region19: #{oct_conv_out_block.1} parent=11 // pred_region
        _
      $region20: #{oct_conv_out_block.1} parent=11 // pred_fallthru
        _
      // Predicated region
      $region21: #{oct_conv_out_block.1} parent=11 // pred_check
        %p195 = pneg %p127
      $region22: #{oct_conv_out_block.1} parent=11 // pred_check_branch
        %197 = sbr.rel (%p195) target = $region24
      $region23: #{oct_conv_out_block.1} parent=11 // pred_region
        _
      $region24: #{oct_conv_out_block.1} parent=11 // pred_fallthru
        _
      // Predicated region
      $region25: #{oct_conv_out_block.1} parent=11 // pred_check
        %p198 = pneg %p148
      $region26: #{oct_conv_out_block.1} parent=11 // pred_check_branch
        %200 = sbr.rel (%p198) target = $region28
      $region27: #{oct_conv_out_block.1} parent=11 // pred_region
        _
      $region28: #{oct_conv_out_block.1} parent=11 // pred_fallthru
        _
    $region12: #{oct_conv_out_block.1} parent=5 // pred_fallthru
      _
    %p201 = scmp.lt.s32.totalorder %s12, 2
    // Predicated region
    $region29: #{oct_conv_out_block.1} parent=5 // pred_check
      %p202 = pneg %p201
    $region30: #{oct_conv_out_block.1} parent=5 // pred_check_branch
      %204 = sbr.rel (%p202) target = $region32
    $region31: #{oct_conv_out_block.1} parent=5 // pred_region
      // Predicated region
      $region33: #{oct_conv_out_block.1} parent=31 // pred_check
        %p205 = pneg %p32
      $region34: #{oct_conv_out_block.1} parent=31 // pred_check_branch
        %207 = sbr.rel (%p205) target = $region36
      $region35: #{oct_conv_out_block.1} parent=31 // pred_region
        %p208 = scmp.lt.s32.totalorder %s12, 1
        %s209 = scalar_select %p208, %s12, 1
        %s210 = smul.addr %s209, 6
        %s211 = smul.addr %s210, 4
        %s212 = scalar_lea.vmem %s0, %s211
      $region36: #{oct_conv_out_block.1} parent=31 // pred_fallthru
        _
      // Predicated region
      $region37: #{oct_conv_out_block.1} parent=31 // pred_check
        %p213 = pneg %p58
      $region38: #{oct_conv_out_block.1} parent=31 // pred_check_branch
        %215 = sbr.rel (%p213) target = $region40
      $region39: #{oct_conv_out_block.1} parent=31 // pred_region
        %p216 = scmp.lt.s32.totalorder %s12, 1
        %s217 = scalar_select %p216, %s12, 1
        %s218 = smul.addr %s217, 2
        %s219 = smul.addr %s218, 4
        %s220 = scalar_lea.vmem %s1, %s219
      $region40: #{oct_conv_out_block.1} parent=31 // pred_fallthru
        _
    $region32: #{oct_conv_out_block.1} parent=5 // pred_fallthru
      _
    %p221 = scmp.le.s32.totalorder 1, %s12
    %p222 = scmp.lt.s32.totalorder %s12, 3
    %p223 = pnand %p221, %p222
    %p224 = pneg %p223
    // Predicated region
    $region41: #{oct_conv_out_block.1} parent=5 // pred_check
      _
    $region42: #{oct_conv_out_block.1} parent=5 // pred_check_branch
      %226 = sbr.rel (%p223) target = $region44
    $region43: #{oct_conv_out_block.1} parent=5 // pred_region
      %s227 = ssub.s32 %s12, 1
      %p228 = scmp.lt.s32.totalorder %s17, 1
      %s229 = scalar_select %p228, %s17, 1
      %s230 = smul.addr %s229, 6
      %s231 = smul.addr %s230, 4
      %s232 = scalar_lea.vmem %s0, %s231
      %p233 = pneg %p38
      %p234 = pneg %p35
      %p235 = scmp.lt.s32.totalorder %s17, 1
      %s236 = scalar_select %p235, %s17, 1
      %s237 = smul.addr %s236, 2
      %s238 = smul.addr %s237, 4
      %s239 = scalar_lea.vmem %s1, %s238
      %p240 = pneg %p64
      %p241 = pneg %p61
      %p242 = pneg %p85
      %p243 = pneg %p82
      %p244 = pneg %p106
      %p245 = pneg %p103
      %p246 = pneg %p127
      %p247 = pneg %p124
      %p248 = pneg %p148
      %p249 = pneg %p145
      %p250 = pneg %p174
      %p251 = pneg %p171
      %p252 = scmp.lt.s32.totalorder %s17, 1
      %s253 = scalar_select %p252, %s17, 1
      %s254 = smul.addr %s253, 3
      %s255 = smul.addr %s254, 4
      %s256 = scalar_lea.vmem %s6, %s255
      %p257 = scmp.lt.s32.totalorder %s17, 1
      %s258 = scalar_select %p257, %s17, 1
      %s259 = smul.addr %s258, 6
      %s260 = smul.addr %s259, 4
      %s261 = scalar_lea.vmem %s0, %s260
      %p262 = scmp.lt.s32.totalorder %s17, 1
      %s263 = scalar_select %p262, %s17, 1
      %s264 = smul.addr %s263, 2
      %s265 = smul.addr %s264, 4
      %s266 = scalar_lea.vmem %s1, %s265
      %p267 = scmp.lt.s32.totalorder %s17, 1
      %s268 = scalar_select %p267, %s17, 1
      %s269 = smul.addr %s268, 3
      %s270 = smul.addr %s269, 4
      %s271 = scalar_lea.vmem %s6, %s270
      %v273 = vld [vmem:[%s261] sm:$0xff]
      %v274 = vld [vmem:[%s261 + $0x8] sm:$0xf]
      %v275 = vld [vmem:[%s261 + $0xc] sm:$0xff]
      %v276 = vld [vmem:[%s261 + $0x14] sm:$0xf]
      %v281 = vunpack.c.l.b16 %v273
      %v282 = vunpack.c.h.b16 %v273
      %v283 = vunpack.c.l.b16 %v274
      %v284 = vunpack.c.l.b16 %v275
      %v285 = vunpack.c.h.b16 %v275
      %v286 = vunpack.c.l.b16 %v276
      %v287 = vpack.c.b16 %v284, %v281
      %v288 = vpack.c.b16 %v285, %v282
      %v289 = vpack.c.b16 %v286, %v283
      %293 = vst [vmem:[#allocation2] sm:$0xff] %v287
      %294 = vst [vmem:[#allocation2 + $0x8] sm:$0xff] %v288
      %vm295 = vcmask 523264
      %296 = vst.msk [vmem:[#allocation2 + $0x10] sm:$0xff] %vm295, %v289
      %v297 = vld [vmem:[%s266] sm:$0xf]
      %v298 = vld [vmem:[%s266 + $0x4] sm:$0xf]
      %v301 = vunpack.c.l.b16 %v297
      %v302 = vunpack.c.l.b16 %v298
      %v303 = vpack.c.b16 %v302, %v301
      %vm305 = vcmask 654336
      %306 = vst.msk [vmem:[#allocation3] sm:$0xff] %vm305, %v303
      %v307 = vld [vmem:[%s261] sm:$0xff]
      %v308 = vld [vmem:[%s261 + $0x8] sm:$0xf]
      %v309 = vld [vmem:[%s261 + $0xc] sm:$0xff]
      %v310 = vld [vmem:[%s261 + $0x14] sm:$0xf]
      %v315 = vunpack.c.l.b16 %v307
      %v316 = vunpack.c.h.b16 %v307
      %v317 = vunpack.c.l.b16 %v308
      %v318 = vunpack.c.l.b16 %v309
      %v319 = vunpack.c.h.b16 %v309
      %v320 = vunpack.c.l.b16 %v310
      %v321 = vpack.c.b16 %v318, %v315
      %v322 = vpack.c.b16 %v319, %v316
      %v323 = vpack.c.b16 %v320, %v317
      %324 = vrot.lane.b32.xlu0 %v321, 127
      %v325 = vpop.permute.xlu0 %324
      %326 = vrot.lane.b32.xlu0 %v322, 127
      %v327 = vpop.permute.xlu0 %326
      %328 = vrot.lane.b32.xlu0 %v323, 127
      %v329 = vpop.permute.xlu0 %328
      %vm330 = vcmask 1039360
      %v331 = vsel %vm330, %v325, %v327
      %v332 = vsel %vm330, %v327, %v329
      %336 = vst [vmem:[#allocation2 + $0x18] sm:$0xff] %v331
      %337 = vst [vmem:[#allocation2 + $0x20] sm:$0xff] %v332
      %338 = vst.msk [vmem:[#allocation2 + $0x28] sm:$0xff] %vm295, %v329
      %v339 = vld [vmem:[%s266] sm:$0xf]
      %v340 = vld [vmem:[%s266 + $0x4] sm:$0xf]
      %v343 = vunpack.c.l.b16 %v339
      %v344 = vunpack.c.l.b16 %v340
      %v345 = vpack.c.b16 %v344, %v343
      %346 = vrot.lane.b32.xlu0 %v345, 127
      %v347 = vpop.permute.xlu0 %346
      %349 = vst.msk [vmem:[#allocation3 + $0x8] sm:$0xff] %vm305, %v347
      %v350 = vld [vmem:[%s261] sm:$0xff]
      %v351 = vld [vmem:[%s261 + $0x8] sm:$0xf]
      %v352 = vld [vmem:[%s261 + $0xc] sm:$0xff]
      %v353 = vld [vmem:[%s261 + $0x14] sm:$0xf]
      %v358 = vunpack.c.l.b16 %v350
      %v359 = vunpack.c.h.b16 %v350
      %v360 = vunpack.c.l.b16 %v351
      %v361 = vunpack.c.l.b16 %v352
      %v362 = vunpack.c.h.b16 %v352
      %v363 = vunpack.c.l.b16 %v353
      %v364 = vpack.c.b16 %v361, %v358
      %v365 = vpack.c.b16 %v362, %v359
      %v366 = vpack.c.b16 %v363, %v360
      %367 = vrot.lane.b32.xlu0 %v364, 126
      %v368 = vpop.permute.xlu0 %367
      %369 = vrot.lane.b32.xlu0 %v365, 126
      %v370 = vpop.permute.xlu0 %369
      %371 = vrot.lane.b32.xlu0 %v366, 126
      %v372 = vpop.permute.xlu0 %371
      %vm373 = vcmask 1031168
      %v374 = vsel %vm373, %v368, %v370
      %v375 = vsel %vm373, %v370, %v372
      %379 = vst [vmem:[#allocation2 + $0x30] sm:$0xff] %v374
      %380 = vst [vmem:[#allocation2 + $0x38] sm:$0xff] %v375
      %381 = vst.msk [vmem:[#allocation2 + $0x40] sm:$0xff] %vm295, %v372
      %v382 = vld [vmem:[%s266] sm:$0xf]
      %v383 = vld [vmem:[%s266 + $0x4] sm:$0xf]
      %v386 = vunpack.c.l.b16 %v382
      %v387 = vunpack.c.l.b16 %v383
      %v388 = vpack.c.b16 %v387, %v386
      %389 = vrot.lane.b32.xlu0 %v388, 126
      %v390 = vpop.permute.xlu0 %389
      %392 = vst.msk [vmem:[#allocation3 + $0x10] sm:$0xff] %vm305, %v390
      %v393 = vld [vmem:[%s261] sm:$0xff]
      %v394 = vld [vmem:[%s261 + $0x8] sm:$0xf]
      %v395 = vld [vmem:[%s261 + $0xc] sm:$0xff]
      %v396 = vld [vmem:[%s261 + $0x14] sm:$0xf]
      %v401 = vunpack.c.l.b16 %v393
      %v402 = vunpack.c.h.b16 %v393
      %v403 = vunpack.c.l.b16 %v394
      %v404 = vunpack.c.l.b16 %v395
      %v405 = vunpack.c.h.b16 %v395
      %v406 = vunpack.c.l.b16 %v396
      %v407 = vpack.c.b16 %v404, %v401
      %v408 = vpack.c.b16 %v405, %v402
      %v409 = vpack.c.b16 %v406, %v403
      %410 = vrot.lane.b32.xlu0 %v407, 108
      %v411 = vpop.permute.xlu0 %410
      %412 = vrot.lane.b32.xlu0 %v408, 108
      %v413 = vpop.permute.xlu0 %412
      %414 = vrot.lane.b32.xlu0 %v409, 108
      %v415 = vpop.permute.xlu0 %414
      %vm416 = vcmask 883712
      %v417 = vsel %vm416, %v411, %v413
      %v418 = vsel %vm416, %v413, %v415
      %422 = vst [vmem:[#allocation2 + $0x48] sm:$0xff] %v417
      %423 = vst [vmem:[#allocation2 + $0x50] sm:$0xff] %v418
      %424 = vst.msk [vmem:[#allocation2 + $0x58] sm:$0xff] %vm295, %v415
      %v425 = vld [vmem:[%s266] sm:$0xf]
      %v426 = vld [vmem:[%s266 + $0x4] sm:$0xf]
      %v429 = vunpack.c.l.b16 %v425
      %v430 = vunpack.c.l.b16 %v426
      %v431 = vpack.c.b16 %v430, %v429
      %432 = vrot.lane.b32.xlu0 %v431, 118
      %v433 = vpop.permute.xlu0 %432
      %435 = vst.msk [vmem:[#allocation3 + $0x18] sm:$0xff] %vm305, %v433
      %v436 = vld [vmem:[%s261] sm:$0xff]
      %v437 = vld [vmem:[%s261 + $0x8] sm:$0xf]
      %v438 = vld [vmem:[%s261 + $0xc] sm:$0xff]
      %v439 = vld [vmem:[%s261 + $0x14] sm:$0xf]
      %v444 = vunpack.c.l.b16 %v436
      %v445 = vunpack.c.h.b16 %v436
      %v446 = vunpack.c.l.b16 %v437
      %v447 = vunpack.c.l.b16 %v438
      %v448 = vunpack.c.h.b16 %v438
      %v449 = vunpack.c.l.b16 %v439
      %v450 = vpack.c.b16 %v447, %v444
      %v451 = vpack.c.b16 %v448, %v445
      %v452 = vpack.c.b16 %v449, %v446
      %453 = vrot.lane.b32.xlu0 %v450, 107
      %v454 = vpop.permute.xlu0 %453
      %455 = vrot.lane.b32.xlu0 %v451, 107
      %v456 = vpop.permute.xlu0 %455
      %457 = vrot.lane.b32.xlu0 %v452, 107
      %v458 = vpop.permute.xlu0 %457
      %vm459 = vcmask 875520
      %v460 = vsel %vm459, %v454, %v456
      %v461 = vsel %vm459, %v456, %v458
      %465 = vst [vmem:[#allocation2 + $0x60] sm:$0xff] %v460
      %466 = vst [vmem:[#allocation2 + $0x68] sm:$0xff] %v461
      %467 = vst.msk [vmem:[#allocation2 + $0x70] sm:$0xff] %vm295, %v458
      %v468 = vld [vmem:[%s266] sm:$0xf]
      %v469 = vld [vmem:[%s266 + $0x4] sm:$0xf]
      %v472 = vunpack.c.l.b16 %v468
      %v473 = vunpack.c.l.b16 %v469
      %v474 = vpack.c.b16 %v473, %v472
      %475 = vrot.lane.b32.xlu0 %v474, 117
      %v476 = vpop.permute.xlu0 %475
      %478 = vst.msk [vmem:[#allocation3 + $0x20] sm:$0xff] %vm305, %v476
      %v479 = vld [vmem:[%s261] sm:$0xff]
      %v480 = vld [vmem:[%s261 + $0x8] sm:$0xf]
      %v481 = vld [vmem:[%s261 + $0xc] sm:$0xff]
      %v482 = vld [vmem:[%s261 + $0x14] sm:$0xf]
      %v487 = vunpack.c.l.b16 %v479
      %v488 = vunpack.c.h.b16 %v479
      %v489 = vunpack.c.l.b16 %v480
      %v490 = vunpack.c.l.b16 %v481
      %v491 = vunpack.c.h.b16 %v481
      %v492 = vunpack.c.l.b16 %v482
      %v493 = vpack.c.b16 %v490, %v487
      %v494 = vpack.c.b16 %v491, %v488
      %v495 = vpack.c.b16 %v492, %v489
      %496 = vrot.lane.b32.xlu0 %v493, 106
      %v497 = vpop.permute.xlu0 %496
      %498 = vrot.lane.b32.xlu0 %v494, 106
      %v499 = vpop.permute.xlu0 %498
      %500 = vrot.lane.b32.xlu0 %v495, 106
      %v501 = vpop.permute.xlu0 %500
      %vm502 = vcmask 867328
      %v503 = vsel %vm502, %v497, %v499
      %v504 = vsel %vm502, %v499, %v501
      %508 = vst [vmem:[#allocation2 + $0x78] sm:$0xff] %v503
      %509 = vst [vmem:[#allocation2 + $0x80] sm:$0xff] %v504
      %510 = vst.msk [vmem:[#allocation2 + $0x88] sm:$0xff] %vm295, %v501
      %v511 = vld [vmem:[%s266] sm:$0xf]
      %v512 = vld [vmem:[%s266 + $0x4] sm:$0xf]
      %v515 = vunpack.c.l.b16 %v511
      %v516 = vunpack.c.l.b16 %v512
      %v517 = vpack.c.b16 %v516, %v515
      %518 = vrot.lane.b32.xlu0 %v517, 116
      %v519 = vpop.permute.xlu0 %518
      %521 = vst.msk [vmem:[#allocation3 + $0x28] sm:$0xff] %vm305, %v519
      %v522 = vld [vmem:[%s261] sm:$0xff]
      %v523 = vld [vmem:[%s261 + $0x8] sm:$0xf]
      %v524 = vld [vmem:[%s261 + $0xc] sm:$0xff]
      %v525 = vld [vmem:[%s261 + $0x14] sm:$0xf]
      %v530 = vunpack.c.l.b16 %v522
      %v531 = vunpack.c.h.b16 %v522
      %v532 = vunpack.c.l.b16 %v523
      %v533 = vunpack.c.l.b16 %v524
      %v534 = vunpack.c.h.b16 %v524
      %v535 = vunpack.c.l.b16 %v525
      %v536 = vpack.c.b16 %v533, %v530
      %v537 = vpack.c.b16 %v534, %v531
      %v538 = vpack.c.b16 %v535, %v532
      %539 = vrot.lane.b32.xlu0 %v536, 88
      %v540 = vpop.permute.xlu0 %539
      %541 = vrot.lane.b32.xlu0 %v537, 88
      %v542 = vpop.permute.xlu0 %541
      %543 = vrot.lane.b32.xlu0 %v538, 88
      %v544 = vpop.permute.xlu0 %543
      %vm545 = vcmask 719872
      %v546 = vsel %vm545, %v540, %v542
      %v547 = vsel %vm545, %v542, %v544
      %551 = vst [vmem:[#allocation2 + $0x90] sm:$0xff] %v546
      %552 = vst [vmem:[#allocation2 + $0x98] sm:$0xff] %v547
      %553 = vst.msk [vmem:[#allocation2 + $0xa0] sm:$0xff] %vm295, %v544
      %v554 = vld [vmem:[%s266] sm:$0xf]
      %v555 = vld [vmem:[%s266 + $0x4] sm:$0xf]
      %v558 = vunpack.c.l.b16 %v554
      %v559 = vunpack.c.l.b16 %v555
      %v560 = vpack.c.b16 %v559, %v558
      %561 = vrot.lane.b32.xlu0 %v560, 108
      %v562 = vpop.permute.xlu0 %561
      %564 = vst.msk [vmem:[#allocation3 + $0x30] sm:$0xff] %vm305, %v562
      %v565 = vld [vmem:[%s261] sm:$0xff]
      %v566 = vld [vmem:[%s261 + $0x8] sm:$0xf]
      %v567 = vld [vmem:[%s261 + $0xc] sm:$0xff]
      %v568 = vld [vmem:[%s261 + $0x14] sm:$0xf]
      %v573 = vunpack.c.l.b16 %v565
      %v574 = vunpack.c.h.b16 %v565
      %v575 = vunpack.c.l.b16 %v566
      %v576 = vunpack.c.l.b16 %v567
      %v577 = vunpack.c.h.b16 %v567
      %v578 = vunpack.c.l.b16 %v568
      %v579 = vpack.c.b16 %v576, %v573
      %v580 = vpack.c.b16 %v577, %v574
      %v581 = vpack.c.b16 %v578, %v575
      %582 = vrot.lane.b32.xlu0 %v579, 87
      %v583 = vpop.permute.xlu0 %582
      %584 = vrot.lane.b32.xlu0 %v580, 87
      %v585 = vpop.permute.xlu0 %584
      %586 = vrot.lane.b32.xlu0 %v581, 87
      %v587 = vpop.permute.xlu0 %586
      %vm588 = vcmask 711680
      %v589 = vsel %vm588, %v583, %v585
      %v590 = vsel %vm588, %v585, %v587
      %594 = vst [vmem:[#allocation2 + $0xa8] sm:$0xff] %v589
      %595 = vst [vmem:[#allocation2 + $0xb0] sm:$0xff] %v590
      %596 = vst.msk [vmem:[#allocation2 + $0xb8] sm:$0xff] %vm295, %v587
      %v597 = vld [vmem:[%s266] sm:$0xf]
      %v598 = vld [vmem:[%s266 + $0x4] sm:$0xf]
      %v601 = vunpack.c.l.b16 %v597
      %v602 = vunpack.c.l.b16 %v598
      %v603 = vpack.c.b16 %v602, %v601
      %604 = vrot.lane.b32.xlu0 %v603, 107
      %v605 = vpop.permute.xlu0 %604
      %607 = vst.msk [vmem:[#allocation3 + $0x38] sm:$0xff] %vm305, %v605
      %v608 = vld [vmem:[%s261] sm:$0xff]
      %v609 = vld [vmem:[%s261 + $0x8] sm:$0xf]
      %v610 = vld [vmem:[%s261 + $0xc] sm:$0xff]
      %v611 = vld [vmem:[%s261 + $0x14] sm:$0xf]
      %v616 = vunpack.c.l.b16 %v608
      %v617 = vunpack.c.h.b16 %v608
      %v618 = vunpack.c.l.b16 %v609
      %v619 = vunpack.c.l.b16 %v610
      %v620 = vunpack.c.h.b16 %v610
      %v621 = vunpack.c.l.b16 %v611
      %v622 = vpack.c.b16 %v619, %v616
      %v623 = vpack.c.b16 %v620, %v617
      %v624 = vpack.c.b16 %v621, %v618
      %625 = vrot.lane.b32.xlu0 %v622, 86
      %v626 = vpop.permute.xlu0 %625
      %627 = vrot.lane.b32.xlu0 %v623, 86
      %v628 = vpop.permute.xlu0 %627
      %629 = vrot.lane.b32.xlu0 %v624, 86
      %v630 = vpop.permute.xlu0 %629
      %vm631 = vcmask 703488
      %v632 = vsel %vm631, %v626, %v628
      %v633 = vsel %vm631, %v628, %v630
      %637 = vst [vmem:[#allocation2 + $0xc0] sm:$0xff] %v632
      %638 = vst [vmem:[#allocation2 + $0xc8] sm:$0xff] %v633
      %639 = vst.msk [vmem:[#allocation2 + $0xd0] sm:$0xff] %vm295, %v630
      %v640 = vld [vmem:[%s266] sm:$0xf]
      %v641 = vld [vmem:[%s266 + $0x4] sm:$0xf]
      %v644 = vunpack.c.l.b16 %v640
      %v645 = vunpack.c.l.b16 %v641
      %v646 = vpack.c.b16 %v645, %v644
      %647 = vrot.lane.b32.xlu0 %v646, 106
      %v648 = vpop.permute.xlu0 %647
      %650 = vst.msk [vmem:[#allocation3 + $0x40] sm:$0xff] %vm305, %v648
      %v651 = vld [vmem:[%s2] sm:$0xff]
      %v652 = vld [vmem:[#allocation2] sm:$0xff]
      %v653 = vld [vmem:[#allocation2 + $0x8] sm:$0xff]
      %v654 = vld [vmem:[#allocation2 + $0x10] sm:$0xff]
      %v655 = vld [vmem:[#allocation2 + $0x18] sm:$0xff]
      %v656 = vld [vmem:[#allocation2 + $0x20] sm:$0xff]
      %v657 = vld [vmem:[#allocation2 + $0x28] sm:$0xff]
      %v658 = vld [vmem:[#allocation2 + $0x30] sm:$0xff]
      %v659 = vld [vmem:[#allocation2 + $0x38] sm:$0xff]
      %v660 = vld [vmem:[#allocation2 + $0x40] sm:$0xff]
      %v661 = vld [vmem:[#allocation2 + $0x48] sm:$0xff]
      %v662 = vld [vmem:[#allocation2 + $0x50] sm:$0xff]
      %v663 = vld [vmem:[#allocation2 + $0x58] sm:$0xff]
      %v664 = vld [vmem:[#allocation2 + $0x60] sm:$0xff]
      %v665 = vld [vmem:[#allocation2 + $0x68] sm:$0xff]
      %v666 = vld [vmem:[#allocation2 + $0x70] sm:$0xff]
      %v667 = vld [vmem:[#allocation2 + $0x78] sm:$0xff]
      %v668 = vld [vmem:[#allocation2 + $0x80] sm:$0xff]
      %v669 = vld [vmem:[#allocation2 + $0x88] sm:$0xff]
      %v670 = vld [vmem:[#allocation2 + $0x90] sm:$0xff]
      %v671 = vld [vmem:[#allocation2 + $0x98] sm:$0xff]
      %v672 = vld [vmem:[#allocation2 + $0xa0] sm:$0xff]
      %v673 = vld [vmem:[#allocation2 + $0xa8] sm:$0xff]
      %v674 = vld [vmem:[#allocation2 + $0xb0] sm:$0xff]
      %v675 = vld [vmem:[#allocation2 + $0xb8] sm:$0xff]
      %v676 = vld [vmem:[#allocation2 + $0xc0] sm:$0xff]
      %v677 = vld [vmem:[#allocation2 + $0xc8] sm:$0xff]
      %v678 = vld [vmem:[#allocation2 + $0xd0] sm:$0xff]
      %v680 = vunpack.c.l.b16 %v651
      %v681 = vunpack.c.h.b16 %v651
      %v682 = vpack.c.b16 %v680, %v680
      %v683 = vpack.c.b16 %v681, %v681
      %vm685 = vcmask 130048
      %v687 = vsel %vm685, %v683, 0
      %689 = vmatprep.subr.bf16.mxu0 %v653
      %690 = vmatpush1.bf16.msra.mxu0 %v652
      %691 = vmatprep.subr.bf16.mxu0 %v656
      %692 = vmatpush1.bf16.msra.mxu0 %v655
      %693 = vmatprep.subr.bf16.mxu0 %v659
      %694 = vmatpush1.bf16.msra.mxu0 %v658
      %695 = vmatprep.subr.bf16.mxu0 %v662
      %696 = vmatpush1.bf16.msra.mxu0 %v661
      %697 = vmatprep.subr.bf16.mxu0 %v665
      %698 = vmatpush1.bf16.msra.mxu0 %v664
      %699 = vmatprep.subr.bf16.mxu0 %v668
      %700 = vmatpush1.bf16.msra.mxu0 %v667
      %701 = vmatprep.subr.bf16.mxu0 %v671
      %702 = vmatpush1.bf16.msra.mxu0 %v670
      %703 = vmatprep.subr.bf16.mxu0 %v674
      %704 = vmatpush1.bf16.msra.mxu0 %v673
      %705 = vmatprep.subr.bf16.mxu0 %v677
      %706 = vmatpush1.bf16.msra.mxu0 %v676
      %707 = vmatprep.subr.bf16.mxu0 0
      %708 = vmatpush1.bf16.msra.mxu0 0
      %709 = vmatprep.subr.bf16.mxu0 0
      %710 = vmatpush1.bf16.msra.mxu0 0
      %711 = vmatprep.subr.bf16.mxu0 0
      %712 = vmatpush1.bf16.msra.mxu0 0
      %713 = vmatprep.subr.bf16.mxu0 0
      %714 = vmatpush1.bf16.msra.mxu0 0
      %715 = vmatprep.subr.bf16.mxu0 0
      %716 = vmatpush1.bf16.msra.mxu0 0
      %717 = vmatprep.subr.bf16.mxu0 0
      %718 = vmatpush1.bf16.msra.mxu0 0
      %719 = vmatprep.subr.bf16.mxu0 0
      %720 = vmatpush1.bf16.msra.mxu0 0
      %721 = vmatprep.mubr.bf16.mxu0 %v687
      %722 = vmatmul.mubr.bf16.gmra.mrb[0].mxu0 %v682
      %v723 = vpop.f32.mrb[0].mxu0
      %v724 = vadd.f32 0.0, %v723
      %v725 = vpop.f32.mrb[0].mxu0
      %v726 = vadd.f32 0.0, %v725
      %v727 = vpop.f32.mrb[0].mxu0
      %v728 = vpop.f32.mrb[0].mxu0
      %729 = vdwg.mxu0
      %730 = vmatprep.subr.bf16.mxu0 0
      %731 = vmatpush1.bf16.msra.mxu0 %v654
      %732 = vmatprep.subr.bf16.mxu0 0
      %733 = vmatpush1.bf16.msra.mxu0 %v657
      %734 = vmatprep.subr.bf16.mxu0 0
      %735 = vmatpush1.bf16.msra.mxu0 %v660
      %736 = vmatprep.subr.bf16.mxu0 0
      %737 = vmatpush1.bf16.msra.mxu0 %v663
      %738 = vmatprep.subr.bf16.mxu0 0
      %739 = vmatpush1.bf16.msra.mxu0 %v666
      %740 = vmatprep.subr.bf16.mxu0 0
      %741 = vmatpush1.bf16.msra.mxu0 %v669
      %742 = vmatprep.subr.bf16.mxu0 0
      %743 = vmatpush1.bf16.msra.mxu0 %v672
      %744 = vmatprep.subr.bf16.mxu0 0
      %745 = vmatpush1.bf16.msra.mxu0 %v675
      %746 = vmatprep.subr.bf16.mxu0 0
      %747 = vmatpush1.bf16.msra.mxu0 %v678
      %748 = vmatprep.subr.bf16.mxu0 0
      %749 = vmatpush1.bf16.msra.mxu0 0
      %750 = vmatprep.subr.bf16.mxu0 0
      %751 = vmatpush1.bf16.msra.mxu0 0
      %752 = vmatprep.subr.bf16.mxu0 0
      %753 = vmatpush1.bf16.msra.mxu0 0
      %754 = vmatprep.subr.bf16.mxu0 0
      %755 = vmatpush1.bf16.msra.mxu0 0
      %756 = vmatprep.subr.bf16.mxu0 0
      %757 = vmatpush1.bf16.msra.mxu0 0
      %758 = vmatprep.subr.bf16.mxu0 0
      %759 = vmatpush1.bf16.msra.mxu0 0
      %760 = vmatprep.subr.bf16.mxu0 0
      %761 = vmatpush1.bf16.msra.mxu0 0
      %762 = vmatprep.mubr.bf16.mxu0 %v687
      %763 = vmatmul.mubr.bf16.gmra.mrb[0].mxu0 %v682
      %v764 = vpop.f32.mrb[0].mxu0
      %v765 = vadd.f32 0.0, %v764
      %v766 = vpop.f32.mrb[0].mxu0
      %v767 = vpop.f32.mrb[0].mxu0
      %v768 = vpop.f32.mrb[0].mxu0
      %769 = vdwg.mxu0
      %v770 = vld [vmem:[%s3] sm:$0xff]
      %v771 = vld [vmem:[#allocation3] sm:$0xff]
      %v772 = vld [vmem:[#allocation3 + $0x8] sm:$0xff]
      %v773 = vld [vmem:[#allocation3 + $0x10] sm:$0xff]
      %v774 = vld [vmem:[#allocation3 + $0x18] sm:$0xff]
      %v775 = vld [vmem:[#allocation3 + $0x20] sm:$0xff]
      %v776 = vld [vmem:[#allocation3 + $0x28] sm:$0xff]
      %v777 = vld [vmem:[#allocation3 + $0x30] sm:$0xff]
      %v778 = vld [vmem:[#allocation3 + $0x38] sm:$0xff]
      %v779 = vld [vmem:[#allocation3 + $0x40] sm:$0xff]
      %v781 = vunpack.c.l.b16 %v770
      %v782 = vunpack.c.h.b16 %v770
      %v783 = vpack.c.b16 %v781, %v781
      %v784 = vpack.c.b16 %v782, %v782
      %v787 = vsel %vm685, %v784, 0
      %789 = vmatprep.subr.bf16.mxu0 0
      %790 = vmatpush1.bf16.msra.mxu0 %v771
      %791 = vmatprep.subr.bf16.mxu0 0
      %792 = vmatpush1.bf16.msra.mxu0 %v772
      %793 = vmatprep.subr.bf16.mxu0 0
      %794 = vmatpush1.bf16.msra.mxu0 %v773
      %795 = vmatprep.subr.bf16.mxu0 0
      %796 = vmatpush1.bf16.msra.mxu0 %v774
      %797 = vmatprep.subr.bf16.mxu0 0
      %798 = vmatpush1.bf16.msra.mxu0 %v775
      %799 = vmatprep.subr.bf16.mxu0 0
      %800 = vmatpush1.bf16.msra.mxu0 %v776
      %801 = vmatprep.subr.bf16.mxu0 0
      %802 = vmatpush1.bf16.msra.mxu0 %v777
      %803 = vmatprep.subr.bf16.mxu0 0
      %804 = vmatpush1.bf16.msra.mxu0 %v778
      %805 = vmatprep.subr.bf16.mxu0 0
      %806 = vmatpush1.bf16.msra.mxu0 %v779
      %807 = vmatprep.subr.bf16.mxu0 0
      %808 = vmatpush1.bf16.msra.mxu0 0
      %809 = vmatprep.subr.bf16.mxu0 0
      %810 = vmatpush1.bf16.msra.mxu0 0
      %811 = vmatprep.subr.bf16.mxu0 0
      %812 = vmatpush1.bf16.msra.mxu0 0
      %813 = vmatprep.subr.bf16.mxu0 0
      %814 = vmatpush1.bf16.msra.mxu0 0
      %815 = vmatprep.subr.bf16.mxu0 0
      %816 = vmatpush1.bf16.msra.mxu0 0
      %817 = vmatprep.subr.bf16.mxu0 0
      %818 = vmatpush1.bf16.msra.mxu0 0
      %819 = vmatprep.subr.bf16.mxu0 0
      %820 = vmatpush1.bf16.msra.mxu0 0
      %821 = vmatprep.mubr.bf16.mxu0 %v787
      %822 = vmatmul.mubr.bf16.gmra.mrb[0].mxu0 %v783
      %v823 = vpop.f32.mrb[0].mxu0
      %v824 = vadd.f32 0.0, %v823
      %v825 = vpop.f32.mrb[0].mxu0
      %v826 = vpop.f32.mrb[0].mxu0
      %v827 = vpop.f32.mrb[0].mxu0
      %828 = vdwg.mxu0
      %v829 = vld [vmem:[%s5] sm:$0xff]
      %v830 = vld [vmem:[%s4] sm:$0xff]
      %v831 = vld [vmem:[%s4 + $0x8] sm:$0x3]
      %vm832 = vcmask 80896
      %v834 = vsel %vm832, %v824, 0
      %vm836 = vcmask 1041408
      %v838 = vsel %vm836, %v831, 0
      %840 = vmatprep.subr.mxu0 0.0
      %841 = vmatpush1.msra.mxu0 %v830
      %842 = vmatprep.subr.mxu0 0.0
      %843 = vmatpush1.msra.mxu0 %v838
      %844 = vmatprep.subr.mxu0 0.0
      %845 = vmatpush1.msra.mxu0 0.0
      %846 = vmatprep.subr.mxu0 0.0
      %847 = vmatpush1.msra.mxu0 0.0
      %848 = vmatprep.subr.mxu0 0.0
      %849 = vmatpush1.msra.mxu0 0.0
      %850 = vmatprep.subr.mxu0 0.0
      %851 = vmatpush1.msra.mxu0 0.0
      %852 = vmatprep.subr.mxu0 0.0
      %853 = vmatpush1.msra.mxu0 0.0
      %854 = vmatprep.subr.mxu0 0.0
      %855 = vmatpush1.msra.mxu0 0.0
      %856 = vmatprep.subr.mxu0 0.0
      %857 = vmatpush1.msra.mxu0 0.0
      %858 = vmatprep.subr.mxu0 0.0
      %859 = vmatpush1.msra.mxu0 0.0
      %860 = vmatprep.subr.mxu0 0.0
      %861 = vmatpush1.msra.mxu0 0.0
      %862 = vmatprep.subr.mxu0 0.0
      %863 = vmatpush1.msra.mxu0 0.0
      %864 = vmatprep.subr.mxu0 0.0
      %865 = vmatpush1.msra.mxu0 0.0
      %866 = vmatprep.subr.mxu0 0.0
      %867 = vmatpush1.msra.mxu0 0.0
      %868 = vmatprep.subr.mxu0 0.0
      %869 = vmatpush1.msra.mxu0 0.0
      %870 = vmatprep.subr.mxu0 0.0
      %871 = vmatpush1.msra.mxu0 0.0
      %872 = vmatprep.subr.mxu0 0.0
      %873 = vmatpush1.msra.mxu0 0.0
      %874 = vmatprep.subr.mxu0 0.0
      %875 = vmatpush1.msra.mxu0 0.0
      %876 = vmatprep.subr.mxu0 0.0
      %877 = vmatpush1.msra.mxu0 0.0
      %878 = vmatprep.subr.mxu0 0.0
      %879 = vmatpush1.msra.mxu0 0.0
      %880 = vmatprep.subr.mxu0 0.0
      %881 = vmatpush1.msra.mxu0 0.0
      %882 = vmatprep.subr.mxu0 0.0
      %883 = vmatpush1.msra.mxu0 0.0
      %884 = vmatprep.subr.mxu0 0.0
      %885 = vmatpush1.msra.mxu0 0.0
      %886 = vmatprep.subr.mxu0 0.0
      %887 = vmatpush1.msra.mxu0 0.0
      %888 = vmatprep.subr.mxu0 0.0
      %889 = vmatpush1.msra.mxu0 0.0
      %890 = vmatprep.subr.mxu0 0.0
      %891 = vmatpush1.msra.mxu0 0.0
      %892 = vmatprep.subr.mxu0 0.0
      %893 = vmatpush1.msra.mxu0 0.0
      %894 = vmatprep.subr.mxu0 0.0
      %895 = vmatpush1.msra.mxu0 0.0
      %896 = vmatprep.subr.mxu0 0.0
      %897 = vmatpush1.msra.mxu0 0.0
      %898 = vmatprep.subr.mxu0 0.0
      %899 = vmatpush1.msra.mxu0 0.0
      %900 = vmatprep.subr.mxu0 0.0
      %901 = vmatpush1.msra.mxu0 0.0
      %902 = vmatprep.subr.mxu0 0.0
      %903 = vmatpush1.msra.mxu0 0.0
      %904 = vmatprep.mubr.f32.mxu0 0.0
      %905 = vmatmul.mubr.f32.gmra.mrb[0].mxu0 %v834
      %v906 = vpop.f32.mrb[0].mxu0
      %v907 = vadd.f32 0.0, %v906
      %v908 = vpop.f32.mrb[0].mxu0
      %909 = vdwg.mxu0
      %v910 = vadd.f32 %v724, %v907
      %912 = vset.pattern.permute.xlu0 0
      %913 = vperm.xlu0 %912, %v829
      %v914 = vpop.permute.xlu0 %913
      %v916 = vadd.f32 %v910, %v914
      %v917 = vmax.f32 %v916, 0.0
      %v918 = vpack.c.bf16 %v917, %v917
      %vm919 = vcmask 158720
      %920 = vst.msk [vmem:[%s271] sm:$0xf] %vm919, %v918
      %922 = vrot.lane.b32.xlu0 %v907, 20
      %v923 = vpop.permute.xlu0 %922
      %v925 = vadd.f32 %v724, %v923
      %v926 = vadd.f32 %v925, %v914
      %v927 = vmax.f32 %v926, 0.0
      %v928 = vpack.c.bf16 %v927, %v927
      %vm929 = vcmask 322720
      %930 = vst.msk [vmem:[%s271] sm:$0xf] %vm929, %v928
      %931 = vrot.lane.b32.xlu0 %v824, 118
      %v932 = vpop.permute.xlu0 %931
      %v933 = vsel %vm832, %v932, 0
      %935 = vmatprep.subr.mxu0 0.0
      %936 = vmatpush1.msra.mxu0 %v830
      %937 = vmatprep.subr.mxu0 0.0
      %938 = vmatpush1.msra.mxu0 %v838
      %939 = vmatprep.subr.mxu0 0.0
      %940 = vmatpush1.msra.mxu0 0.0
      %941 = vmatprep.subr.mxu0 0.0
      %942 = vmatpush1.msra.mxu0 0.0
      %943 = vmatprep.subr.mxu0 0.0
      %944 = vmatpush1.msra.mxu0 0.0
      %945 = vmatprep.subr.mxu0 0.0
      %946 = vmatpush1.msra.mxu0 0.0
      %947 = vmatprep.subr.mxu0 0.0
      %948 = vmatpush1.msra.mxu0 0.0
      %949 = vmatprep.subr.mxu0 0.0
      %950 = vmatpush1.msra.mxu0 0.0
      %951 = vmatprep.subr.mxu0 0.0
      %952 = vmatpush1.msra.mxu0 0.0
      %953 = vmatprep.subr.mxu0 0.0
      %954 = vmatpush1.msra.mxu0 0.0
      %955 = vmatprep.subr.mxu0 0.0
      %956 = vmatpush1.msra.mxu0 0.0
      %957 = vmatprep.subr.mxu0 0.0
      %958 = vmatpush1.msra.mxu0 0.0
      %959 = vmatprep.subr.mxu0 0.0
      %960 = vmatpush1.msra.mxu0 0.0
      %961 = vmatprep.subr.mxu0 0.0
      %962 = vmatpush1.msra.mxu0 0.0
      %963 = vmatprep.subr.mxu0 0.0
      %964 = vmatpush1.msra.mxu0 0.0
      %965 = vmatprep.subr.mxu0 0.0
      %966 = vmatpush1.msra.mxu0 0.0
      %967 = vmatprep.subr.mxu0 0.0
      %968 = vmatpush1.msra.mxu0 0.0
      %969 = vmatprep.subr.mxu0 0.0
      %970 = vmatpush1.msra.mxu0 0.0
      %971 = vmatprep.subr.mxu0 0.0
      %972 = vmatpush1.msra.mxu0 0.0
      %973 = vmatprep.subr.mxu0 0.0
      %974 = vmatpush1.msra.mxu0 0.0
      %975 = vmatprep.subr.mxu0 0.0
      %976 = vmatpush1.msra.mxu0 0.0
      %977 = vmatprep.subr.mxu0 0.0
      %978 = vmatpush1.msra.mxu0 0.0
      %979 = vmatprep.subr.mxu0 0.0
      %980 = vmatpush1.msra.mxu0 0.0
      %981 = vmatprep.subr.mxu0 0.0
      %982 = vmatpush1.msra.mxu0 0.0
      %983 = vmatprep.subr.mxu0 0.0
      %984 = vmatpush1.msra.mxu0 0.0
      %985 = vmatprep.subr.mxu0 0.0
      %986 = vmatpush1.msra.mxu0 0.0
      %987 = vmatprep.subr.mxu0 0.0
      %988 = vmatpush1.msra.mxu0 0.0
      %989 = vmatprep.subr.mxu0 0.0
      %990 = vmatpush1.msra.mxu0 0.0
      %991 = vmatprep.subr.mxu0 0.0
      %992 = vmatpush1.msra.mxu0 0.0
      %993 = vmatprep.subr.mxu0 0.0
      %994 = vmatpush1.msra.mxu0 0.0
      %995 = vmatprep.subr.mxu0 0.0
      %996 = vmatpush1.msra.mxu0 0.0
      %997 = vmatprep.subr.mxu0 0.0
      %998 = vmatpush1.msra.mxu0 0.0
      %999 = vmatprep.mubr.f32.mxu0 0.0
      %1000 = vmatmul.mubr.f32.gmra.mrb[0].mxu0 %v933
      %v1001 = vpop.f32.mrb[0].mxu0
      %v1002 = vadd.f32 0.0, %v1001
      %v1003 = vpop.f32.mrb[0].mxu0
      %1004 = vdwg.mxu0
      %1006 = vrot.lane.b32.xlu0 %v1002, 40
      %v1007 = vpop.permute.xlu0 %1006
      %v1009 = vadd.f32 %v724, %v1007
      %v1010 = vadd.f32 %v1009, %v914
      %v1011 = vmax.f32 %v1010, 0.0
      %v1012 = vpack.c.bf16 %v1011, %v1011
      %vm1013 = vcmask 486720
      %1014 = vst.msk [vmem:[%s271] sm:$0xf] %vm1013, %v1012
      %1015 = vrot.lane.b32.xlu0 %v1002, 60
      %v1016 = vpop.permute.xlu0 %1015
      %v1018 = vadd.f32 %v724, %v1016
      %v1019 = vadd.f32 %v1018, %v914
      %v1020 = vmax.f32 %v1019, 0.0
      %v1021 = vpack.c.bf16 %v1020, %v1020
      %vm1022 = vcmask 650720
      %1023 = vst.msk [vmem:[%s271] sm:$0xf] %vm1022, %v1021
      %1024 = vrot.lane.b32.xlu0 %v824, 108
      %v1025 = vpop.permute.xlu0 %1024
      %v1026 = vsel %vm832, %v1025, 0
      %1028 = vmatprep.subr.mxu0 0.0
      %1029 = vmatpush1.msra.mxu0 %v830
      %1030 = vmatprep.subr.mxu0 0.0
      %1031 = vmatpush1.msra.mxu0 %v838
      %1032 = vmatprep.subr.mxu0 0.0
      %1033 = vmatpush1.msra.mxu0 0.0
      %1034 = vmatprep.subr.mxu0 0.0
      %1035 = vmatpush1.msra.mxu0 0.0
      %1036 = vmatprep.subr.mxu0 0.0
      %1037 = vmatpush1.msra.mxu0 0.0
      %1038 = vmatprep.subr.mxu0 0.0
      %1039 = vmatpush1.msra.mxu0 0.0
      %1040 = vmatprep.subr.mxu0 0.0
      %1041 = vmatpush1.msra.mxu0 0.0
      %1042 = vmatprep.subr.mxu0 0.0
      %1043 = vmatpush1.msra.mxu0 0.0
      %1044 = vmatprep.subr.mxu0 0.0
      %1045 = vmatpush1.msra.mxu0 0.0
      %1046 = vmatprep.subr.mxu0 0.0
      %1047 = vmatpush1.msra.mxu0 0.0
      %1048 = vmatprep.subr.mxu0 0.0
      %1049 = vmatpush1.msra.mxu0 0.0
      %1050 = vmatprep.subr.mxu0 0.0
      %1051 = vmatpush1.msra.mxu0 0.0
      %1052 = vmatprep.subr.mxu0 0.0
      %1053 = vmatpush1.msra.mxu0 0.0
      %1054 = vmatprep.subr.mxu0 0.0
      %1055 = vmatpush1.msra.mxu0 0.0
      %1056 = vmatprep.subr.mxu0 0.0
      %1057 = vmatpush1.msra.mxu0 0.0
      %1058 = vmatprep.subr.mxu0 0.0
      %1059 = vmatpush1.msra.mxu0 0.0
      %1060 = vmatprep.subr.mxu0 0.0
      %1061 = vmatpush1.msra.mxu0 0.0
      %1062 = vmatprep.subr.mxu0 0.0
      %1063 = vmatpush1.msra.mxu0 0.0
      %1064 = vmatprep.subr.mxu0 0.0
      %1065 = vmatpush1.msra.mxu0 0.0
      %1066 = vmatprep.subr.mxu0 0.0
      %1067 = vmatpush1.msra.mxu0 0.0
      %1068 = vmatprep.subr.mxu0 0.0
      %1069 = vmatpush1.msra.mxu0 0.0
      %1070 = vmatprep.subr.mxu0 0.0
      %1071 = vmatpush1.msra.mxu0 0.0
      %1072 = vmatprep.subr.mxu0 0.0
      %1073 = vmatpush1.msra.mxu0 0.0
      %1074 = vmatprep.subr.mxu0 0.0
      %1075 = vmatpush1.msra.mxu0 0.0
      %1076 = vmatprep.subr.mxu0 0.0
      %1077 = vmatpush1.msra.mxu0 0.0
      %1078 = vmatprep.subr.mxu0 0.0
      %1079 = vmatpush1.msra.mxu0 0.0
      %1080 = vmatprep.subr.mxu0 0.0
      %1081 = vmatpush1.msra.mxu0 0.0
      %1082 = vmatprep.subr.mxu0 0.0
      %1083 = vmatpush1.msra.mxu0 0.0
      %1084 = vmatprep.subr.mxu0 0.0
      %1085 = vmatpush1.msra.mxu0 0.0
      %1086 = vmatprep.subr.mxu0 0.0
      %1087 = vmatpush1.msra.mxu0 0.0
      %1088 = vmatprep.subr.mxu0 0.0
      %1089 = vmatpush1.msra.mxu0 0.0
      %1090 = vmatprep.subr.mxu0 0.0
      %1091 = vmatpush1.msra.mxu0 0.0
      %1092 = vmatprep.mubr.f32.mxu0 0.0
      %1093 = vmatmul.mubr.f32.gmra.mrb[0].mxu0 %v1026
      %v1094 = vpop.f32.mrb[0].mxu0
      %v1095 = vadd.f32 0.0, %v1094
      %v1096 = vpop.f32.mrb[0].mxu0
      %1097 = vdwg.mxu0
      %1099 = vrot.lane.b32.xlu0 %v1095, 80
      %v1100 = vpop.permute.xlu0 %1099
      %v1102 = vadd.f32 %v724, %v1100
      %v1103 = vadd.f32 %v1102, %v914
      %v1104 = vmax.f32 %v1103, 0.0
      %v1105 = vpack.c.bf16 %v1104, %v1104
      %vm1106 = vcmask 814720
      %1107 = vst.msk [vmem:[%s271] sm:$0xf] %vm1106, %v1105
      %1108 = vrot.lane.b32.xlu0 %v1095, 100
      %v1109 = vpop.permute.xlu0 %1108
      %v1111 = vadd.f32 %v724, %v1109
      %v1112 = vadd.f32 %v1111, %v914
      %v1113 = vmax.f32 %v1112, 0.0
      %v1114 = vpack.c.bf16 %v1113, %v1113
      %vm1115 = vcmask 978720
      %1116 = vst.msk [vmem:[%s271] sm:$0xf] %vm1115, %v1114
      %1117 = vrot.lane.b32.xlu0 %v824, 98
      %v1118 = vpop.permute.xlu0 %1117
      %v1119 = vsel %vm832, %v1118, 0
      %1121 = vmatprep.subr.mxu0 0.0
      %1122 = vmatpush1.msra.mxu0 %v830
      %1123 = vmatprep.subr.mxu0 0.0
      %1124 = vmatpush1.msra.mxu0 %v838
      %1125 = vmatprep.subr.mxu0 0.0
      %1126 = vmatpush1.msra.mxu0 0.0
      %1127 = vmatprep.subr.mxu0 0.0
      %1128 = vmatpush1.msra.mxu0 0.0
      %1129 = vmatprep.subr.mxu0 0.0
      %1130 = vmatpush1.msra.mxu0 0.0
      %1131 = vmatprep.subr.mxu0 0.0
      %1132 = vmatpush1.msra.mxu0 0.0
      %1133 = vmatprep.subr.mxu0 0.0
      %1134 = vmatpush1.msra.mxu0 0.0
      %1135 = vmatprep.subr.mxu0 0.0
      %1136 = vmatpush1.msra.mxu0 0.0
      %1137 = vmatprep.subr.mxu0 0.0
      %1138 = vmatpush1.msra.mxu0 0.0
      %1139 = vmatprep.subr.mxu0 0.0
      %1140 = vmatpush1.msra.mxu0 0.0
      %1141 = vmatprep.subr.mxu0 0.0
      %1142 = vmatpush1.msra.mxu0 0.0
      %1143 = vmatprep.subr.mxu0 0.0
      %1144 = vmatpush1.msra.mxu0 0.0
      %1145 = vmatprep.subr.mxu0 0.0
      %1146 = vmatpush1.msra.mxu0 0.0
      %1147 = vmatprep.subr.mxu0 0.0
      %1148 = vmatpush1.msra.mxu0 0.0
      %1149 = vmatprep.subr.mxu0 0.0
      %1150 = vmatpush1.msra.mxu0 0.0
      %1151 = vmatprep.subr.mxu0 0.0
      %1152 = vmatpush1.msra.mxu0 0.0
      %1153 = vmatprep.subr.mxu0 0.0
      %1154 = vmatpush1.msra.mxu0 0.0
      %1155 = vmatprep.subr.mxu0 0.0
      %1156 = vmatpush1.msra.mxu0 0.0
      %1157 = vmatprep.subr.mxu0 0.0
      %1158 = vmatpush1.msra.mxu0 0.0
      %1159 = vmatprep.subr.mxu0 0.0
      %1160 = vmatpush1.msra.mxu0 0.0
      %1161 = vmatprep.subr.mxu0 0.0
      %1162 = vmatpush1.msra.mxu0 0.0
      %1163 = vmatprep.subr.mxu0 0.0
      %1164 = vmatpush1.msra.mxu0 0.0
      %1165 = vmatprep.subr.mxu0 0.0
      %1166 = vmatpush1.msra.mxu0 0.0
      %1167 = vmatprep.subr.mxu0 0.0
      %1168 = vmatpush1.msra.mxu0 0.0
      %1169 = vmatprep.subr.mxu0 0.0
      %1170 = vmatpush1.msra.mxu0 0.0
      %1171 = vmatprep.subr.mxu0 0.0
      %1172 = vmatpush1.msra.mxu0 0.0
      %1173 = vmatprep.subr.mxu0 0.0
      %1174 = vmatpush1.msra.mxu0 0.0
      %1175 = vmatprep.subr.mxu0 0.0
      %1176 = vmatpush1.msra.mxu0 0.0
      %1177 = vmatprep.subr.mxu0 0.0
      %1178 = vmatpush1.msra.mxu0 0.0
      %1179 = vmatprep.subr.mxu0 0.0
      %1180 = vmatpush1.msra.mxu0 0.0
      %1181 = vmatprep.subr.mxu0 0.0
      %1182 = vmatpush1.msra.mxu0 0.0
      %1183 = vmatprep.subr.mxu0 0.0
      %1184 = vmatpush1.msra.mxu0 0.0
      %1185 = vmatprep.mubr.f32.mxu0 0.0
      %1186 = vmatmul.mubr.f32.gmra.mrb[0].mxu0 %v1119
      %v1187 = vpop.f32.mrb[0].mxu0
      %v1188 = vadd.f32 0.0, %v1187
      %v1189 = vpop.f32.mrb[0].mxu0
      %1190 = vdwg.mxu0
      %1192 = vrot.lane.b32.xlu0 %v1188, 120
      %v1193 = vpop.permute.xlu0 %1192
      %v1195 = vadd.f32 %v724, %v1193
      %v1196 = vadd.f32 %v726, %v1193
      %v1197 = vadd.f32 %v1195, %v914
      %v1198 = vadd.f32 %v1196, %v914
      %v1199 = vmax.f32 %v1197, 0.0
      %v1200 = vmax.f32 %v1198, 0.0
      %v1201 = vpack.c.bf16 %v1199, %v1199
      %v1202 = vpack.c.bf16 %v1200, %v1200
      %v1205 = vunpack.c.l.b16 %v1201
      %v1206 = vunpack.c.l.b16 %v1202
      %v1207 = vpack.c.b16 %v1206, %v1205
      %vm1209 = vcmask 1044416
      %vm1210 = vcmask 97284
      %vm1211 = vmor %vm1210, %vm1209
      %1212 = vst.msk [vmem:[%s271] sm:$0xff] %vm1211, %v1207
      %1213 = vrot.lane.b32.xlu0 %v1188, 12
      %v1214 = vpop.permute.xlu0 %1213
      %v1216 = vadd.f32 %v726, %v1214
      %v1217 = vadd.f32 %v1216, %v914
      %v1218 = vmax.f32 %v1217, 0.0
      %v1219 = vpack.c.bf16 %v1218, %v1218
      %vm1220 = vcmask 257120
      %1221 = vst.msk [vmem:[%s271 + $0x4] sm:$0xf] %vm1220, %v1219
      %1222 = vrot.lane.b32.xlu0 %v824, 88
      %v1223 = vpop.permute.xlu0 %1222
      %v1224 = vsel %vm832, %v1223, 0
      %1226 = vmatprep.subr.mxu0 0.0
      %1227 = vmatpush1.msra.mxu0 %v830
      %1228 = vmatprep.subr.mxu0 0.0
      %1229 = vmatpush1.msra.mxu0 %v838
      %1230 = vmatprep.subr.mxu0 0.0
      %1231 = vmatpush1.msra.mxu0 0.0
      %1232 = vmatprep.subr.mxu0 0.0
      %1233 = vmatpush1.msra.mxu0 0.0
      %1234 = vmatprep.subr.mxu0 0.0
      %1235 = vmatpush1.msra.mxu0 0.0
      %1236 = vmatprep.subr.mxu0 0.0
      %1237 = vmatpush1.msra.mxu0 0.0
      %1238 = vmatprep.subr.mxu0 0.0
      %1239 = vmatpush1.msra.mxu0 0.0
      %1240 = vmatprep.subr.mxu0 0.0
      %1241 = vmatpush1.msra.mxu0 0.0
      %1242 = vmatprep.subr.mxu0 0.0
      %1243 = vmatpush1.msra.mxu0 0.0
      %1244 = vmatprep.subr.mxu0 0.0
      %1245 = vmatpush1.msra.mxu0 0.0
      %1246 = vmatprep.subr.mxu0 0.0
      %1247 = vmatpush1.msra.mxu0 0.0
      %1248 = vmatprep.subr.mxu0 0.0
      %1249 = vmatpush1.msra.mxu0 0.0
      %1250 = vmatprep.subr.mxu0 0.0
      %1251 = vmatpush1.msra.mxu0 0.0
      %1252 = vmatprep.subr.mxu0 0.0
      %1253 = vmatpush1.msra.mxu0 0.0
      %1254 = vmatprep.subr.mxu0 0.0
      %1255 = vmatpush1.msra.mxu0 0.0
      %1256 = vmatprep.subr.mxu0 0.0
      %1257 = vmatpush1.msra.mxu0 0.0
      %1258 = vmatprep.subr.mxu0 0.0
      %1259 = vmatpush1.msra.mxu0 0.0
      %1260 = vmatprep.subr.mxu0 0.0
      %1261 = vmatpush1.msra.mxu0 0.0
      %1262 = vmatprep.subr.mxu0 0.0
      %1263 = vmatpush1.msra.mxu0 0.0
      %1264 = vmatprep.subr.mxu0 0.0
      %1265 = vmatpush1.msra.mxu0 0.0
      %1266 = vmatprep.subr.mxu0 0.0
      %1267 = vmatpush1.msra.mxu0 0.0
      %1268 = vmatprep.subr.mxu0 0.0
      %1269 = vmatpush1.msra.mxu0 0.0
      %1270 = vmatprep.subr.mxu0 0.0
      %1271 = vmatpush1.msra.mxu0 0.0
      %1272 = vmatprep.subr.mxu0 0.0
      %1273 = vmatpush1.msra.mxu0 0.0
      %1274 = vmatprep.subr.mxu0 0.0
      %1275 = vmatpush1.msra.mxu0 0.0
      %1276 = vmatprep.subr.mxu0 0.0
      %1277 = vmatpush1.msra.mxu0 0.0
      %1278 = vmatprep.subr.mxu0 0.0
      %1279 = vmatpush1.msra.mxu0 0.0
      %1280 = vmatprep.subr.mxu0 0.0
      %1281 = vmatpush1.msra.mxu0 0.0
      %1282 = vmatprep.subr.mxu0 0.0
      %1283 = vmatpush1.msra.mxu0 0.0
      %1284 = vmatprep.subr.mxu0 0.0
      %1285 = vmatpush1.msra.mxu0 0.0
      %1286 = vmatprep.subr.mxu0 0.0
      %1287 = vmatpush1.msra.mxu0 0.0
      %1288 = vmatprep.subr.mxu0 0.0
      %1289 = vmatpush1.msra.mxu0 0.0
      %1290 = vmatprep.mubr.f32.mxu0 0.0
      %1291 = vmatmul.mubr.f32.gmra.mrb[0].mxu0 %v1224
      %v1292 = vpop.f32.mrb[0].mxu0
      %v1293 = vadd.f32 0.0, %v1292
      %v1294 = vpop.f32.mrb[0].mxu0
      %1295 = vdwg.mxu0
      %1297 = vrot.lane.b32.xlu0 %v1293, 32
      %v1298 = vpop.permute.xlu0 %1297
      %v1300 = vadd.f32 %v726, %v1298
      %v1301 = vadd.f32 %v1300, %v914
      %v1302 = vmax.f32 %v1301, 0.0
      %v1303 = vpack.c.bf16 %v1302, %v1302
      %vm1304 = vcmask 421120
      %1305 = vst.msk [vmem:[%s271 + $0x4] sm:$0xf] %vm1304, %v1303
      %1306 = vrot.lane.b32.xlu0 %v1293, 52
      %v1307 = vpop.permute.xlu0 %1306
      %v1309 = vadd.f32 %v726, %v1307
      %v1310 = vadd.f32 %v1309, %v914
      %v1311 = vmax.f32 %v1310, 0.0
      %v1312 = vpack.c.bf16 %v1311, %v1311
      %vm1313 = vcmask 585120
      %1314 = vst.msk [vmem:[%s271 + $0x4] sm:$0xf] %vm1313, %v1312
      %1315 = vrot.lane.b32.xlu0 %v824, 78
      %v1316 = vpop.permute.xlu0 %1315
      %v1317 = vsel %vm832, %v1316, 0
      %1319 = vmatprep.subr.mxu0 0.0
      %1320 = vmatpush1.msra.mxu0 %v830
      %1321 = vmatprep.subr.mxu0 0.0
      %1322 = vmatpush1.msra.mxu0 %v838
      %1323 = vmatprep.subr.mxu0 0.0
      %1324 = vmatpush1.msra.mxu0 0.0
      %1325 = vmatprep.subr.mxu0 0.0
      %1326 = vmatpush1.msra.mxu0 0.0
      %1327 = vmatprep.subr.mxu0 0.0
      %1328 = vmatpush1.msra.mxu0 0.0
      %1329 = vmatprep.subr.mxu0 0.0
      %1330 = vmatpush1.msra.mxu0 0.0
      %1331 = vmatprep.subr.mxu0 0.0
      %1332 = vmatpush1.msra.mxu0 0.0
      %1333 = vmatprep.subr.mxu0 0.0
      %1334 = vmatpush1.msra.mxu0 0.0
      %1335 = vmatprep.subr.mxu0 0.0
      %1336 = vmatpush1.msra.mxu0 0.0
      %1337 = vmatprep.subr.mxu0 0.0
      %1338 = vmatpush1.msra.mxu0 0.0
      %1339 = vmatprep.subr.mxu0 0.0
      %1340 = vmatpush1.msra.mxu0 0.0
      %1341 = vmatprep.subr.mxu0 0.0
      %1342 = vmatpush1.msra.mxu0 0.0
      %1343 = vmatprep.subr.mxu0 0.0
      %1344 = vmatpush1.msra.mxu0 0.0
      %1345 = vmatprep.subr.mxu0 0.0
      %1346 = vmatpush1.msra.mxu0 0.0
      %1347 = vmatprep.subr.mxu0 0.0
      %1348 = vmatpush1.msra.mxu0 0.0
      %1349 = vmatprep.subr.mxu0 0.0
      %1350 = vmatpush1.msra.mxu0 0.0
      %1351 = vmatprep.subr.mxu0 0.0
      %1352 = vmatpush1.msra.mxu0 0.0
      %1353 = vmatprep.subr.mxu0 0.0
      %1354 = vmatpush1.msra.mxu0 0.0
      %1355 = vmatprep.subr.mxu0 0.0
      %1356 = vmatpush1.msra.mxu0 0.0
      %1357 = vmatprep.subr.mxu0 0.0
      %1358 = vmatpush1.msra.mxu0 0.0
      %1359 = vmatprep.subr.mxu0 0.0
      %1360 = vmatpush1.msra.mxu0 0.0
      %1361 = vmatprep.subr.mxu0 0.0
      %1362 = vmatpush1.msra.mxu0 0.0
      %1363 = vmatprep.subr.mxu0 0.0
      %1364 = vmatpush1.msra.mxu0 0.0
      %1365 = vmatprep.subr.mxu0 0.0
      %1366 = vmatpush1.msra.mxu0 0.0
      %1367 = vmatprep.subr.mxu0 0.0
      %1368 = vmatpush1.msra.mxu0 0.0
      %1369 = vmatprep.subr.mxu0 0.0
      %1370 = vmatpush1.msra.mxu0 0.0
      %1371 = vmatprep.subr.mxu0 0.0
      %1372 = vmatpush1.msra.mxu0 0.0
      %1373 = vmatprep.subr.mxu0 0.0
      %1374 = vmatpush1.msra.mxu0 0.0
      %1375 = vmatprep.subr.mxu0 0.0
      %1376 = vmatpush1.msra.mxu0 0.0
      %1377 = vmatprep.subr.mxu0 0.0
      %1378 = vmatpush1.msra.mxu0 0.0
      %1379 = vmatprep.subr.mxu0 0.0
      %1380 = vmatpush1.msra.mxu0 0.0
      %1381 = vmatprep.subr.mxu0 0.0
      %1382 = vmatpush1.msra.mxu0 0.0
      %1383 = vmatprep.mubr.f32.mxu0 0.0
      %1384 = vmatmul.mubr.f32.gmra.mrb[0].mxu0 %v1317
      %v1385 = vpop.f32.mrb[0].mxu0
      %v1386 = vadd.f32 0.0, %v1385
      %v1387 = vpop.f32.mrb[0].mxu0
      %1388 = vdwg.mxu0
      %1390 = vrot.lane.b32.xlu0 %v1386, 72
      %v1391 = vpop.permute.xlu0 %1390
      %v1393 = vadd.f32 %v726, %v1391
      %v1394 = vadd.f32 %v1393, %v914
      %v1395 = vmax.f32 %v1394, 0.0
      %v1396 = vpack.c.bf16 %v1395, %v1395
      %vm1397 = vcmask 749120
      %1398 = vst.msk [vmem:[%s271 + $0x4] sm:$0xf] %vm1397, %v1396
      %1399 = vrot.lane.b32.xlu0 %v1386, 92
      %v1400 = vpop.permute.xlu0 %1399
      %v1402 = vadd.f32 %v726, %v1400
      %v1403 = vadd.f32 %v1402, %v914
      %v1404 = vmax.f32 %v1403, 0.0
      %v1405 = vpack.c.bf16 %v1404, %v1404
      %vm1406 = vcmask 913120
      %1407 = vst.msk [vmem:[%s271 + $0x4] sm:$0xf] %vm1406, %v1405
      %1408 = vrot.lane.b32.xlu0 %v824, 68
      %v1409 = vpop.permute.xlu0 %1408
      %v1410 = vsel %vm832, %v1409, 0
      %1412 = vmatprep.subr.mxu0 0.0
      %1413 = vmatpush1.msra.mxu0 %v830
      %1414 = vmatprep.subr.mxu0 0.0
      %1415 = vmatpush1.msra.mxu0 %v838
      %1416 = vmatprep.subr.mxu0 0.0
      %1417 = vmatpush1.msra.mxu0 0.0
      %1418 = vmatprep.subr.mxu0 0.0
      %1419 = vmatpush1.msra.mxu0 0.0
      %1420 = vmatprep.subr.mxu0 0.0
      %1421 = vmatpush1.msra.mxu0 0.0
      %1422 = vmatprep.subr.mxu0 0.0
      %1423 = vmatpush1.msra.mxu0 0.0
      %1424 = vmatprep.subr.mxu0 0.0
      %1425 = vmatpush1.msra.mxu0 0.0
      %1426 = vmatprep.subr.mxu0 0.0
      %1427 = vmatpush1.msra.mxu0 0.0
      %1428 = vmatprep.subr.mxu0 0.0
      %1429 = vmatpush1.msra.mxu0 0.0
      %1430 = vmatprep.subr.mxu0 0.0
      %1431 = vmatpush1.msra.mxu0 0.0
      %1432 = vmatprep.subr.mxu0 0.0
      %1433 = vmatpush1.msra.mxu0 0.0
      %1434 = vmatprep.subr.mxu0 0.0
      %1435 = vmatpush1.msra.mxu0 0.0
      %1436 = vmatprep.subr.mxu0 0.0
      %1437 = vmatpush1.msra.mxu0 0.0
      %1438 = vmatprep.subr.mxu0 0.0
      %1439 = vmatpush1.msra.mxu0 0.0
      %1440 = vmatprep.subr.mxu0 0.0
      %1441 = vmatpush1.msra.mxu0 0.0
      %1442 = vmatprep.subr.mxu0 0.0
      %1443 = vmatpush1.msra.mxu0 0.0
      %1444 = vmatprep.subr.mxu0 0.0
      %1445 = vmatpush1.msra.mxu0 0.0
      %1446 = vmatprep.subr.mxu0 0.0
      %1447 = vmatpush1.msra.mxu0 0.0
      %1448 = vmatprep.subr.mxu0 0.0
      %1449 = vmatpush1.msra.mxu0 0.0
      %1450 = vmatprep.subr.mxu0 0.0
      %1451 = vmatpush1.msra.mxu0 0.0
      %1452 = vmatprep.subr.mxu0 0.0
      %1453 = vmatpush1.msra.mxu0 0.0
      %1454 = vmatprep.subr.mxu0 0.0
      %1455 = vmatpush1.msra.mxu0 0.0
      %1456 = vmatprep.subr.mxu0 0.0
      %1457 = vmatpush1.msra.mxu0 0.0
      %1458 = vmatprep.subr.mxu0 0.0
      %1459 = vmatpush1.msra.mxu0 0.0
      %1460 = vmatprep.subr.mxu0 0.0
      %1461 = vmatpush1.msra.mxu0 0.0
      %1462 = vmatprep.subr.mxu0 0.0
      %1463 = vmatpush1.msra.mxu0 0.0
      %1464 = vmatprep.subr.mxu0 0.0
      %1465 = vmatpush1.msra.mxu0 0.0
      %1466 = vmatprep.subr.mxu0 0.0
      %1467 = vmatpush1.msra.mxu0 0.0
      %1468 = vmatprep.subr.mxu0 0.0
      %1469 = vmatpush1.msra.mxu0 0.0
      %1470 = vmatprep.subr.mxu0 0.0
      %1471 = vmatpush1.msra.mxu0 0.0
      %1472 = vmatprep.subr.mxu0 0.0
      %1473 = vmatpush1.msra.mxu0 0.0
      %1474 = vmatprep.subr.mxu0 0.0
      %1475 = vmatpush1.msra.mxu0 0.0
      %1476 = vmatprep.mubr.f32.mxu0 0.0
      %1477 = vmatmul.mubr.f32.gmra.mrb[0].mxu0 %v1410
      %v1478 = vpop.f32.mrb[0].mxu0
      %v1479 = vadd.f32 0.0, %v1478
      %v1480 = vpop.f32.mrb[0].mxu0
      %1481 = vdwg.mxu0
      %1483 = vrot.lane.b32.xlu0 %v1479, 112
      %v1484 = vpop.permute.xlu0 %1483
      %v1486 = vadd.f32 %v726, %v1484
      %v1487 = vadd.f32 %v765, %v1484
      %v1488 = vadd.f32 %v1486, %v914
      %v1489 = vadd.f32 %v1487, %v914
      %v1490 = vmax.f32 %v1488, 0.0
      %v1491 = vmax.f32 %v1489, 0.0
      %v1492 = vpack.c.bf16 %v1490, %v1490
      %v1493 = vpack.c.bf16 %v1491, %v1491
      %v1496 = vunpack.c.l.b16 %v1492
      %v1497 = vunpack.c.l.b16 %v1493
      %v1498 = vpack.c.b16 %v1497, %v1496
      %vm1500 = vcmask 1044352
      %vm1501 = vcmask 31748
      %vm1502 = vmor %vm1501, %vm1500
      %1503 = vst.msk [vmem:[%s271 + $0x4] sm:$0xff] %vm1502, %v1498
      %1504 = vrot.lane.b32.xlu0 %v1479, 4
      %v1505 = vpop.permute.xlu0 %1504
      %v1507 = vadd.f32 %v765, %v1505
      %v1508 = vadd.f32 %v1507, %v914
      %v1509 = vmax.f32 %v1508, 0.0
      %v1510 = vpack.c.bf16 %v1509, %v1509
      %vm1511 = vcmask 191520
      %1512 = vst.msk [vmem:[%s271 + $0x8] sm:$0xf] %vm1511, %v1510
      %1513 = vrot.lane.b32.xlu0 %v824, 58
      %v1514 = vpop.permute.xlu0 %1513
      %v1515 = vsel %vm832, %v1514, 0
      %1517 = vmatprep.subr.mxu0 0.0
      %1518 = vmatpush1.msra.mxu0 %v830
      %1519 = vmatprep.subr.mxu0 0.0
      %1520 = vmatpush1.msra.mxu0 %v838
      %1521 = vmatprep.subr.mxu0 0.0
      %1522 = vmatpush1.msra.mxu0 0.0
      %1523 = vmatprep.subr.mxu0 0.0
      %1524 = vmatpush1.msra.mxu0 0.0
      %1525 = vmatprep.subr.mxu0 0.0
      %1526 = vmatpush1.msra.mxu0 0.0
      %1527 = vmatprep.subr.mxu0 0.0
      %1528 = vmatpush1.msra.mxu0 0.0
      %1529 = vmatprep.subr.mxu0 0.0
      %1530 = vmatpush1.msra.mxu0 0.0
      %1531 = vmatprep.subr.mxu0 0.0
      %1532 = vmatpush1.msra.mxu0 0.0
      %1533 = vmatprep.subr.mxu0 0.0
      %1534 = vmatpush1.msra.mxu0 0.0
      %1535 = vmatprep.subr.mxu0 0.0
      %1536 = vmatpush1.msra.mxu0 0.0
      %1537 = vmatprep.subr.mxu0 0.0
      %1538 = vmatpush1.msra.mxu0 0.0
      %1539 = vmatprep.subr.mxu0 0.0
      %1540 = vmatpush1.msra.mxu0 0.0
      %1541 = vmatprep.subr.mxu0 0.0
      %1542 = vmatpush1.msra.mxu0 0.0
      %1543 = vmatprep.subr.mxu0 0.0
      %1544 = vmatpush1.msra.mxu0 0.0
      %1545 = vmatprep.subr.mxu0 0.0
      %1546 = vmatpush1.msra.mxu0 0.0
      %1547 = vmatprep.subr.mxu0 0.0
      %1548 = vmatpush1.msra.mxu0 0.0
      %1549 = vmatprep.subr.mxu0 0.0
      %1550 = vmatpush1.msra.mxu0 0.0
      %1551 = vmatprep.subr.mxu0 0.0
      %1552 = vmatpush1.msra.mxu0 0.0
      %1553 = vmatprep.subr.mxu0 0.0
      %1554 = vmatpush1.msra.mxu0 0.0
      %1555 = vmatprep.subr.mxu0 0.0
      %1556 = vmatpush1.msra.mxu0 0.0
      %1557 = vmatprep.subr.mxu0 0.0
      %1558 = vmatpush1.msra.mxu0 0.0
      %1559 = vmatprep.subr.mxu0 0.0
      %1560 = vmatpush1.msra.mxu0 0.0
      %1561 = vmatprep.subr.mxu0 0.0
      %1562 = vmatpush1.msra.mxu0 0.0
      %1563 = vmatprep.subr.mxu0 0.0
      %1564 = vmatpush1.msra.mxu0 0.0
      %1565 = vmatprep.subr.mxu0 0.0
      %1566 = vmatpush1.msra.mxu0 0.0
      %1567 = vmatprep.subr.mxu0 0.0
      %1568 = vmatpush1.msra.mxu0 0.0
      %1569 = vmatprep.subr.mxu0 0.0
      %1570 = vmatpush1.msra.mxu0 0.0
      %1571 = vmatprep.subr.mxu0 0.0
      %1572 = vmatpush1.msra.mxu0 0.0
      %1573 = vmatprep.subr.mxu0 0.0
      %1574 = vmatpush1.msra.mxu0 0.0
      %1575 = vmatprep.subr.mxu0 0.0
      %1576 = vmatpush1.msra.mxu0 0.0
      %1577 = vmatprep.subr.mxu0 0.0
      %1578 = vmatpush1.msra.mxu0 0.0
      %1579 = vmatprep.subr.mxu0 0.0
      %1580 = vmatpush1.msra.mxu0 0.0
      %1581 = vmatprep.mubr.f32.mxu0 0.0
      %1582 = vmatmul.mubr.f32.gmra.mrb[0].mxu0 %v1515
      %v1583 = vpop.f32.mrb[0].mxu0
      %v1584 = vadd.f32 0.0, %v1583
      %v1585 = vpop.f32.mrb[0].mxu0
      %1586 = vdwg.mxu0
      %1588 = vrot.lane.b32.xlu0 %v1584, 24
      %v1589 = vpop.permute.xlu0 %1588
      %v1591 = vadd.f32 %v765, %v1589
      %v1592 = vadd.f32 %v1591, %v914
      %v1593 = vmax.f32 %v1592, 0.0
      %v1594 = vpack.c.bf16 %v1593, %v1593
      %vm1595 = vcmask 355520
      %1596 = vst.msk [vmem:[%s271 + $0x8] sm:$0xf] %vm1595, %v1594
      %1597 = vrot.lane.b32.xlu0 %v1584, 44
      %v1598 = vpop.permute.xlu0 %1597
      %v1600 = vadd.f32 %v765, %v1598
      %v1601 = vadd.f32 %v1600, %v914
      %v1602 = vmax.f32 %v1601, 0.0
      %v1603 = vpack.c.bf16 %v1602, %v1602
      %vm1604 = vcmask 519520
      %1605 = vst.msk [vmem:[%s271 + $0x8] sm:$0xf] %vm1604, %v1603
      %p1606 = scmp.lt.s32.totalorder %s17, 1
      %s1607 = scalar_select %p1606, %s17, 1
      %s1608 = smul.addr %s1607, 3
      %s1609 = smul.addr %s1608, 4
      %s1610 = scalar_lea.vmem %s6, %s1609
      // Predicated region
      $region45: #{oct_conv_out_block.1} parent=43 // pred_check
        %p1611 = pneg %p171
      $region46: #{oct_conv_out_block.1} parent=43 // pred_check_branch
        %1613 = sbr.rel (%p1611) target = $region48
      $region47: #{oct_conv_out_block.1} parent=43 // pred_region
        _
      $region48: #{oct_conv_out_block.1} parent=43 // pred_fallthru
        _
    $region44: #{oct_conv_out_block.1} parent=5 // pred_fallthru
      _
    %p1614 = scmp.le.s32.totalorder 2, %s12
    // Predicated region
    $region49: #{oct_conv_out_block.1} parent=5 // pred_check
      %p1615 = pneg %p1614
    $region50: #{oct_conv_out_block.1} parent=5 // pred_check_branch
      %1617 = sbr.rel (%p1615) target = $region52
    $region51: #{oct_conv_out_block.1} parent=5 // pred_region
      %s1618 = ssub.s32 %s12, 2
      // Predicated region
      $region53: #{oct_conv_out_block.1} parent=51 // pred_check
        %p1619 = pneg %p177
      $region54: #{oct_conv_out_block.1} parent=51 // pred_check_branch
        %1621 = sbr.rel (%p1619) target = $region56
      $region55: #{oct_conv_out_block.1} parent=51 // pred_region
        %p1622 = scmp.lt.s32.totalorder %s18, 1
        %s1623 = scalar_select %p1622, %s18, 1
        %s1624 = smul.addr %s1623, 3
        %s1625 = smul.addr %s1624, 4
        %s1626 = scalar_lea.vmem %s6, %s1625
      $region56: #{oct_conv_out_block.1} parent=51 // pred_fallthru
        _
    $region52: #{oct_conv_out_block.1} parent=5 // pred_fallthru
      _
  $region6: #{oct_conv_out_block.1} parent=0 // loop_footer
    %s16 = sadd.s32 1, %s12
  $region7: #{oct_conv_out_block.1} parent=0 // loop_footer_branch
    %11 = sbr.rel target = $region3
  $region8: #{oct_conv_out_block.1} parent=0 // loop_exit
    _

</llo_original>
